<compile_context>
chip_gen: v7x
topology: tpu7x:2x2x1
jax: 0.10.0
libtpu: 0.0.40
codegen_flags: <defaults>
</compile_context>

<pallas_src>
import functools

import numpy as np
import jax
import jax.numpy as jnp
from jax.experimental import pallas as pl
from jax.experimental.pallas import tpu as pltpu

# ----------------------- ModelArgs-equivalent config (small) -----------------------
DIM = 256                  # args.dim (small stand-in for 4096)
MULTIPLE_OF = 256          # args.multiple_of (matches ModelArgs default)
FFN_DIM_MULTIPLIER = None  # args.ffn_dim_multiplier
BATCH = 2
SEQ = 8


def _hidden_dim(dim, multiple_of, ffn_dim_multiplier):
    hidden = 4 * dim
    hidden = int(2 * hidden / 3)
    if ffn_dim_multiplier is not None:
        hidden = int(ffn_dim_multiplier * hidden)
    return multiple_of * ((hidden + multiple_of - 1) // multiple_of)


HIDDEN = _hidden_dim(DIM, MULTIPLE_OF, FFN_DIM_MULTIPLIER)    # 768


# --------------------------------- Pallas kernel -----------------------------------
def ffn_kernel(x_ref, w13_ref, w2_ref, o_ref, *, hidden):
    # Activations -> bf16 once; both projections reuse it (MXU is bf16-native).
    x = x_ref[...].astype(jnp.bfloat16)                                  # (TM, D)

    # Gate projection from the first H lanes of the fused w1|w3 weight.
    g = jnp.dot(x, w13_ref[:, :hidden],
                preferred_element_type=jnp.float32)                      # (TM, H) f32
    g = g * jax.nn.sigmoid(g)                                            # silu, f32

    # Up projection from the second H lanes (static, 128-aligned slice).
    u = jnp.dot(x, w13_ref[:, hidden:],
                preferred_element_type=jnp.float32)                      # (TM, H) f32

    h = (g * u).astype(jnp.bfloat16)                                     # (TM, H) bf16
    o_ref[...] = jnp.dot(h, w2_ref[...],
                         preferred_element_type=jnp.float32)             # (TM, D) f32


# ------------------------------ pallas_call wrapper --------------------------------
def feed_forward(x, w1, w2, w3, *, block_rows=None):
    """x: (B, S, D) f32; w1/w3: (H, D); w2: (D, H)  (torch nn.Linear layout)."""
    B, S, D = x.shape
    H = w1.shape[0]
    rows = B * S
    assert D % 128 == 0 and H % 128 == 0, "lane alignment (128) required"

    if block_rows is None:
        # Single block for tiny inputs; MXU-dense 256-row tile otherwise.
        block_rows = rows if rows <= 256 else 256
    tm = block_rows
    assert rows % tm == 0 and tm % 8 == 0, "row tile must be (8)-aligned and divide rows"

    # Host-side prep: transpose to (in, out), fuse w1|w3 column-wise, cast to bf16.
    w13 = jnp.concatenate([w1.T, w3.T], axis=1).astype(jnp.bfloat16)     # (D, 2H)
    w2t = w2.T.astype(jnp.bfloat16)                                      # (H, D)
    x2 = x.reshape(rows, D)

    cost = pl.CostEstimate(
        flops=6 * rows * D * H,                 # (TM,D)x(D,2H) + (TM,H)x(H,D)
        transcendentals=rows * H,               # one exp per sigmoid
        bytes_accessed=(x2.size * 4 + w13.size * 2 + w2t.size * 2 + rows * D * 4),
    )

    kern = functools.partial(ffn_kernel, hidden=H)
    out = pl.pallas_call(
        kern,
        grid=(rows // tm,),
        in_specs=[
            # Activations: tiled along the flattened row axis, pipelined.
            pl.BlockSpec((tm, D), lambda i: (i, 0)),
            # Fused w1|w3: resident (constant block index), single-buffered.
            pl.BlockSpec((D, 2 * H), lambda i: (0, 0),
                         pipeline_mode=pl.Buffered(1)),
            # w2: resident, single-buffered.
            pl.BlockSpec((H, D), lambda i: (0, 0),
                         pipeline_mode=pl.Buffered(1)),
        ],
        out_specs=pl.BlockSpec((tm, D), lambda i: (i, 0)),
        out_shape=jax.ShapeDtypeStruct((rows, D), jnp.float32),
        compiler_params=pltpu.CompilerParams(
            dimension_semantics=("parallel",)),
        cost_estimate=cost,
    )(x2, w13, w2t)
    return out.reshape(B, S, D)


# ---------------------------- pure-JAX reference (torch math) ----------------------
def ref_feed_forward(x, w1, w2, w3):
    P = jax.lax.Precision.HIGHEST
    g = jnp.einsum("bsd,hd->bsh", x, w1, precision=P)
    g = g * jax.nn.sigmoid(g)                        # F.silu
    u = jnp.einsum("bsd,hd->bsh", x, w3, precision=P)
    return jnp.einsum("bsh,dh->bsd", g * u, w2, precision=P)


# --------------------------------------- main --------------------------------------
if __name__ == "__main__":
    key = jax.random.PRNGKey(0)
    kx, k1, k2, k3 = jax.random.split(key, 4)

    x = jax.random.normal(kx, (BATCH, SEQ, DIM), dtype=jnp.float32)
    s_in = 1.0 / np.sqrt(DIM)
    s_hid = 1.0 / np.sqrt(HIDDEN)
    # torch nn.Linear weight layout: (out_features, in_features)
    w1 = s_in * jax.random.normal(k1, (HIDDEN, DIM), dtype=jnp.float32)
    w2 = s_hid * jax.random.normal(k2, (DIM, HIDDEN), dtype=jnp.float32)
    w3 = s_in * jax.random.normal(k3, (HIDDEN, DIM), dtype=jnp.float32)

    out = jax.block_until_ready(feed_forward(x, w1, w2, w3))
    ref = jax.block_until_ready(ref_feed_forward(x, w1, w2, w3))

    assert out.shape == (BATCH, SEQ, DIM)
    # bf16 MXU operands with f32 accumulation vs. an f32 HIGHEST-precision
    # reference: bf16-appropriate tolerance.
    max_err = float(np.max(np.abs(np.asarray(out) - np.asarray(ref))))
    assert np.allclose(np.asarray(out), np.asarray(ref), rtol=3e-2, atol=3e-2), (
        "mismatch", max_err)

    print("KERNEL_OK")
</pallas_src>

<mosaic_0001>
module attributes {stable_mosaic.version = 11 : i64} {
  func.func @ffn_kernel(%arg0: i32, %arg1: memref<16x256xf32, #tpu.memory_space<vmem>>, %arg2: memref<256x1536xbf16, #tpu.memory_space<vmem>>, %arg3: memref<768x256xbf16, #tpu.memory_space<vmem>>, %arg4: memref<16x256xf32, #tpu.memory_space<vmem>>) attributes {dimension_semantics = [#tpu.dimension_semantics<parallel>], iteration_bounds = array<i64: 1>, scalar_prefetch = 0 : i64, scratch_operands = 0 : i64, tpu.core_type = #tpu.core_type<tc>, window_params = [{transform_indices = @transform_0, window_bounds = array<i64: 16, 256>}, {pipeline_mode = #tpu.pipeline_mode<synchronous>, transform_indices = @transform_1, window_bounds = array<i64: 256, 1536>}, {pipeline_mode = #tpu.pipeline_mode<synchronous>, transform_indices = @transform_2, window_bounds = array<i64: 768, 256>}, {transform_indices = @transform_3, window_bounds = array<i64: 16, 256>}]} {
    %c0 = arith.constant 0 : index
    %c0_0 = arith.constant 0 : index
    %0 = vector.load %arg1[%c0, %c0_0] : memref<16x256xf32, #tpu.memory_space<vmem>>, vector<16x256xf32>
    %1 = arith.truncf %0 : vector<16x256xf32> to vector<16x256xbf16>
    %c0_1 = arith.constant 0 : index
    %c0_2 = arith.constant 0 : index
    %2 = vector.load %arg2[%c0_1, %c0_2] : memref<256x1536xbf16, #tpu.memory_space<vmem>>, vector<256x768xbf16>
    %cst = arith.constant dense<0.000000e+00> : vector<16x768xf32>
    %3 = tpu.matmul %1, %2, %cst {dimension_numbers = #tpu.dot_dimension_numbers<[1], [0], [0], [1], [0, 0, 1, 1], [], []>} : vector<16x256xbf16>, vector<256x768xbf16>, vector<16x768xf32> -> vector<16x768xf32>
    %4 = arith.negf %3 : vector<16x768xf32>
    %5 = math.exp %4 : vector<16x768xf32>
    %cst_3 = arith.constant 1.000000e+00 : f32
    %6 = vector.broadcast %cst_3 : f32 to vector<16x768xf32>
    %7 = arith.addf %6, %5 : vector<16x768xf32>
    %8 = arith.divf %6, %7 : vector<16x768xf32>
    %9 = arith.mulf %3, %8 : vector<16x768xf32>
    %c0_4 = arith.constant 0 : index
    %c768 = arith.constant 768 : index
    %10 = vector.load %arg2[%c0_4, %c768] : memref<256x1536xbf16, #tpu.memory_space<vmem>>, vector<256x768xbf16>
    %cst_5 = arith.constant dense<0.000000e+00> : vector<16x768xf32>
    %11 = tpu.matmul %1, %10, %cst_5 {dimension_numbers = #tpu.dot_dimension_numbers<[1], [0], [0], [1], [0, 0, 1, 1], [], []>} : vector<16x256xbf16>, vector<256x768xbf16>, vector<16x768xf32> -> vector<16x768xf32>
    %12 = arith.mulf %9, %11 : vector<16x768xf32>
    %13 = arith.truncf %12 : vector<16x768xf32> to vector<16x768xbf16>
    %c0_6 = arith.constant 0 : index
    %c0_7 = arith.constant 0 : index
    %14 = vector.load %arg3[%c0_6, %c0_7] : memref<768x256xbf16, #tpu.memory_space<vmem>>, vector<768x256xbf16>
    %cst_8 = arith.constant dense<0.000000e+00> : vector<16x256xf32>
    %15 = tpu.matmul %13, %14, %cst_8 {dimension_numbers = #tpu.dot_dimension_numbers<[1], [0], [0], [1], [0, 0, 1, 1], [], []>} : vector<16x768xbf16>, vector<768x256xbf16>, vector<16x256xf32> -> vector<16x256xf32>
    %c0_9 = arith.constant 0 : index
    %c0_10 = arith.constant 0 : index
    %16 = vector.load %arg4[%c0_9, %c0_10] : memref<16x256xf32, #tpu.memory_space<vmem>>, vector<16x256xf32>
    tpu.vector_store %arg4[%c0_9, %c0_10], %15 {strides = array<i32>} : memref<16x256xf32, #tpu.memory_space<vmem>>, vector<16x256xf32>,
    return
  }
  func.func @transform_0(%arg0: i32) -> (i32, i32) {
    %c0_i32 = arith.constant 0 : i32
    %c0_i32_0 = arith.constant 0 : i32
    return %arg0, %c0_i32 : i32, i32
  }
  func.func @transform_1(%arg0: i32) -> (i32, i32) {
    %c0_i32 = arith.constant 0 : i32
    %c0_i32_0 = arith.constant 0 : i32
    %c0_i32_1 = arith.constant 0 : i32
    return %c0_i32, %c0_i32_0 : i32, i32
  }
  func.func @transform_2(%arg0: i32) -> (i32, i32) {
    %c0_i32 = arith.constant 0 : i32
    %c0_i32_0 = arith.constant 0 : i32
    %c0_i32_1 = arith.constant 0 : i32
    return %c0_i32, %c0_i32_0 : i32, i32
  }
  func.func @transform_3(%arg0: i32) -> (i32, i32) {
    %c0_i32 = arith.constant 0 : i32
    %c0_i32_0 = arith.constant 0 : i32
    return %arg0, %c0_i32 : i32, i32
  }
}

</mosaic_0001>

<llo_original>
// kernel: tpu_custom_call.1
$region0: #{tpu_custom_call.1}
  #allocation0 [shape = 'u32[]', space=smem, size = 0x4, offset = 0x4, fixed_abs, tag = 'smem constant byte address 0x4 - core index']
  #allocation1 [shape = 'u32[144,128]{1,0:T(1,128)}', space=vmem, size = 0x12000, scoped, tag = 'internal scratch']
  %s0 = inlined_call_operand.hbm [shape: f32[16,256], index: 0, kind: input, shape index: {}]
  %s1 = inlined_call_operand.hbm [shape: bf16[256,1536], index: 1, kind: input, shape index: {}]
  %s2 = inlined_call_operand.hbm [shape: bf16[768,256], index: 2, kind: input, shape index: {}]
  %s3 = inlined_call_operand.hbm [shape: f32[16,256], index: 3, kind: output, shape index: {}]
  %s4 = sld [smem:[#allocation0]]
  $region34: #{tpu_custom_call.1} parent=0
    _
  %s6 = ssub.s32 1, %s4
  %s7 = scalar_select 0, %s6, %s4
  $region1: #{tpu_custom_call.1} parent=0
    #allocation2 [shape = 'u8[16384]{0}', space=vmem, size = 0x4000, scoped, tag = 'input window, operand 0, single buffered']
    #allocation3 [shape = 's32[1]{0}', space=sflag, size = 0x4, scoped, tag = 'scoped memory for tpu_custom_call.1']
    #allocation4 [shape = 's32[1]{0}', space=sflag, size = 0x4, scoped, tag = 'scoped memory for tpu_custom_call.1']
    #allocation5 [shape = 'u8[786432]{0}', space=vmem, size = 0xc0000, scoped, tag = 'input window, operand 1, single buffered']
    #allocation6 [shape = 's32[1]{0}', space=sflag, size = 0x4, scoped, tag = 'scoped memory for tpu_custom_call.1']
    #allocation7 [shape = 'u8[393216]{0}', space=vmem, size = 0x60000, scoped, tag = 'input window, operand 2, single buffered']
    #allocation8 [shape = 'u8[16384]{0}', space=vmem, size = 0x4000, scoped, tag = 'output window, operand 0, single buffered']
    %8 = vsyncpa [#allocation3], 0
    %9 = vsyncpa [#allocation6], 0
    %10 = vsyncpa [#allocation4], 0
    // Predicated region
    $region2: #{tpu_custom_call.1} parent=1 // pred_check
      _
    $region3: #{tpu_custom_call.1} parent=1 // pred_check_branch
      %12 = sbr.rel (0) target = $region5
    $region4: #{tpu_custom_call.1} parent=1 // pred_region
      %s14 = ssub.s32 512, 512
      %15 = vsyncadd [#allocation3], %s14
      %s16 = sshll.u32 [#allocation2], 4
      %s17 = int_to_ptr.vmem [resolvable:$true] %s16
      %22 = dma.hbm_to_vmem [thread:$0]  %s0, 512, %s17, [#allocation3], 256, 256, 16
    $region5: #{tpu_custom_call.1} parent=1 // pred_fallthru
      _
    // Predicated region
    $region6: #{tpu_custom_call.1} parent=1 // pred_check
      _
    $region7: #{tpu_custom_call.1} parent=1 // pred_check_branch
      %24 = sbr.rel (0) target = $region9
    $region8: #{tpu_custom_call.1} parent=1 // pred_region
      %s26 = ssub.s32 24576, 24576
      %27 = vsyncadd [#allocation6], %s26
      %s28 = sshll.u32 [#allocation5], 4
      %s29 = int_to_ptr.vmem [resolvable:$true] %s28
      %34 = dma.hbm_to_vmem [thread:$0]  %s1, 24576, %s29, [#allocation6], 768, 768, 48
    $region9: #{tpu_custom_call.1} parent=1 // pred_fallthru
      _
    // Predicated region
    $region10: #{tpu_custom_call.1} parent=1 // pred_check
      _
    $region11: #{tpu_custom_call.1} parent=1 // pred_check_branch
      %36 = sbr.rel (0) target = $region13
    $region12: #{tpu_custom_call.1} parent=1 // pred_region
      %s38 = ssub.s32 12288, 12288
      %39 = vsyncadd [#allocation6], %s38
      %s40 = sshll.u32 [#allocation7], 4
      %s41 = int_to_ptr.vmem [resolvable:$true] %s40
      %46 = dma.hbm_to_vmem [thread:$0]  %s2, 12288, %s41, [#allocation6], 128, 128, 8
    $region13: #{tpu_custom_call.1} parent=1 // pred_fallthru
      _
    // Predicated region
    $region14: #{tpu_custom_call.1} parent=1 // pred_check
      _
    $region15: #{tpu_custom_call.1} parent=1 // pred_check_branch
      %48 = sbr.rel (0) target = $region17
    $region16: #{tpu_custom_call.1} parent=1 // pred_region
      %49 = dma.done [#allocation3], 512
    $region17: #{tpu_custom_call.1} parent=1 // pred_fallthru
      _
    // Predicated region
    $region18: #{tpu_custom_call.1} parent=1 // pred_check
      _
    $region19: #{tpu_custom_call.1} parent=1 // pred_check_branch
      %51 = sbr.rel (0) target = $region21
    $region20: #{tpu_custom_call.1} parent=1 // pred_region
      %52 = dma.done [#allocation6], 24576
    $region21: #{tpu_custom_call.1} parent=1 // pred_fallthru
      _
    // Predicated region
    $region22: #{tpu_custom_call.1} parent=1 // pred_check
      _
    $region23: #{tpu_custom_call.1} parent=1 // pred_check_branch
      %54 = sbr.rel (0) target = $region25
    $region24: #{tpu_custom_call.1} parent=1 // pred_region
      %55 = dma.done [#allocation6], 12288
    $region25: #{tpu_custom_call.1} parent=1 // pred_fallthru
      _
    %v56 = vld [vmem:[#allocation2] sm:$0xff]
    %v57 = vld [vmem:[#allocation2 + $0x8] sm:$0xff]
    %v58 = vld [vmem:[#allocation2 + $0x10] sm:$0xff]
    %v59 = vld [vmem:[#allocation2 + $0x18] sm:$0xff]
    %v60 = vpack.c.bf16 %v58, %v56
    %v61 = vpack.c.bf16 %v59, %v57
    %v62 = vld [vmem:[#allocation5] sm:$0xff]
    %v63 = vld [vmem:[#allocation5 + $0x8] sm:$0xff]
    %v64 = vld [vmem:[#allocation5 + $0x10] sm:$0xff]
    %v65 = vld [vmem:[#allocation5 + $0x30] sm:$0xff]
    %v66 = vld [vmem:[#allocation5 + $0x38] sm:$0xff]
    %v67 = vld [vmem:[#allocation5 + $0x40] sm:$0xff]
    %v68 = vld [vmem:[#allocation5 + $0x60] sm:$0xff]
    %v69 = vld [vmem:[#allocation5 + $0x68] sm:$0xff]
    %v70 = vld [vmem:[#allocation5 + $0x70] sm:$0xff]
    %v71 = vld [vmem:[#allocation5 + $0x90] sm:$0xff]
    %v72 = vld [vmem:[#allocation5 + $0x98] sm:$0xff]
    %v73 = vld [vmem:[#allocation5 + $0xa0] sm:$0xff]
    %v74 = vld [vmem:[#allocation5 + $0xc0] sm:$0xff]
    %v75 = vld [vmem:[#allocation5 + $0xc8] sm:$0xff]
    %v76 = vld [vmem:[#allocation5 + $0xd0] sm:$0xff]
    %v77 = vld [vmem:[#allocation5 + $0xf0] sm:$0xff]
    %v78 = vld [vmem:[#allocation5 + $0xf8] sm:$0xff]
    %v79 = vld [vmem:[#allocation5 + $0x100] sm:$0xff]
    %v80 = vld [vmem:[#allocation5 + $0x120] sm:$0xff]
    %v81 = vld [vmem:[#allocation5 + $0x128] sm:$0xff]
    %v82 = vld [vmem:[#allocation5 + $0x130] sm:$0xff]
    %v83 = vld [vmem:[#allocation5 + $0x150] sm:$0xff]
    %v84 = vld [vmem:[#allocation5 + $0x158] sm:$0xff]
    %v85 = vld [vmem:[#allocation5 + $0x160] sm:$0xff]
    %v86 = vld [vmem:[#allocation5 + $0x180] sm:$0xff]
    %v87 = vld [vmem:[#allocation5 + $0x188] sm:$0xff]
    %v88 = vld [vmem:[#allocation5 + $0x190] sm:$0xff]
    %v89 = vld [vmem:[#allocation5 + $0x1b0] sm:$0xff]
    %v90 = vld [vmem:[#allocation5 + $0x1b8] sm:$0xff]
    %v91 = vld [vmem:[#allocation5 + $0x1c0] sm:$0xff]
    %v92 = vld [vmem:[#allocation5 + $0x1e0] sm:$0xff]
    %v93 = vld [vmem:[#allocation5 + $0x1e8] sm:$0xff]
    %v94 = vld [vmem:[#allocation5 + $0x1f0] sm:$0xff]
    %v95 = vld [vmem:[#allocation5 + $0x210] sm:$0xff]
    %v96 = vld [vmem:[#allocation5 + $0x218] sm:$0xff]
    %v97 = vld [vmem:[#allocation5 + $0x220] sm:$0xff]
    %v98 = vld [vmem:[#allocation5 + $0x240] sm:$0xff]
    %v99 = vld [vmem:[#allocation5 + $0x248] sm:$0xff]
    %v100 = vld [vmem:[#allocation5 + $0x250] sm:$0xff]
    %v101 = vld [vmem:[#allocation5 + $0x270] sm:$0xff]
    %v102 = vld [vmem:[#allocation5 + $0x278] sm:$0xff]
    %v103 = vld [vmem:[#allocation5 + $0x280] sm:$0xff]
    %v104 = vld [vmem:[#allocation5 + $0x2a0] sm:$0xff]
    %v105 = vld [vmem:[#allocation5 + $0x2a8] sm:$0xff]
    %v106 = vld [vmem:[#allocation5 + $0x2b0] sm:$0xff]
    %v107 = vld [vmem:[#allocation5 + $0x2d0] sm:$0xff]
    %v108 = vld [vmem:[#allocation5 + $0x2d8] sm:$0xff]
    %v109 = vld [vmem:[#allocation5 + $0x2e0] sm:$0xff]
    %v110 = vld [vmem:[#allocation5 + $0x300] sm:$0xff]
    %v111 = vld [vmem:[#allocation5 + $0x308] sm:$0xff]
    %v112 = vld [vmem:[#allocation5 + $0x310] sm:$0xff]
    %v113 = vld [vmem:[#allocation5 + $0x330] sm:$0xff]
    %v114 = vld [vmem:[#allocation5 + $0x338] sm:$0xff]
    %v115 = vld [vmem:[#allocation5 + $0x340] sm:$0xff]
    %v116 = vld [vmem:[#allocation5 + $0x360] sm:$0xff]
    %v117 = vld [vmem:[#allocation5 + $0x368] sm:$0xff]
    %v118 = vld [vmem:[#allocation5 + $0x370] sm:$0xff]
    %v119 = vld [vmem:[#allocation5 + $0x390] sm:$0xff]
    %v120 = vld [vmem:[#allocation5 + $0x398] sm:$0xff]
    %v121 = vld [vmem:[#allocation5 + $0x3a0] sm:$0xff]
    %v122 = vld [vmem:[#allocation5 + $0x3c0] sm:$0xff]
    %v123 = vld [vmem:[#allocation5 + $0x3c8] sm:$0xff]
    %v124 = vld [vmem:[#allocation5 + $0x3d0] sm:$0xff]
    %v125 = vld [vmem:[#allocation5 + $0x3f0] sm:$0xff]
    %v126 = vld [vmem:[#allocation5 + $0x3f8] sm:$0xff]
    %v127 = vld [vmem:[#allocation5 + $0x400] sm:$0xff]
    %v128 = vld [vmem:[#allocation5 + $0x420] sm:$0xff]
    %v129 = vld [vmem:[#allocation5 + $0x428] sm:$0xff]
    %v130 = vld [vmem:[#allocation5 + $0x430] sm:$0xff]
    %v131 = vld [vmem:[#allocation5 + $0x450] sm:$0xff]
    %v132 = vld [vmem:[#allocation5 + $0x458] sm:$0xff]
    %v133 = vld [vmem:[#allocation5 + $0x460] sm:$0xff]
    %v134 = vld [vmem:[#allocation5 + $0x480] sm:$0xff]
    %v135 = vld [vmem:[#allocation5 + $0x488] sm:$0xff]
    %v136 = vld [vmem:[#allocation5 + $0x490] sm:$0xff]
    %v137 = vld [vmem:[#allocation5 + $0x4b0] sm:$0xff]
    %v138 = vld [vmem:[#allocation5 + $0x4b8] sm:$0xff]
    %v139 = vld [vmem:[#allocation5 + $0x4c0] sm:$0xff]
    %v140 = vld [vmem:[#allocation5 + $0x4e0] sm:$0xff]
    %v141 = vld [vmem:[#allocation5 + $0x4e8] sm:$0xff]
    %v142 = vld [vmem:[#allocation5 + $0x4f0] sm:$0xff]
    %v143 = vld [vmem:[#allocation5 + $0x510] sm:$0xff]
    %v144 = vld [vmem:[#allocation5 + $0x518] sm:$0xff]
    %v145 = vld [vmem:[#allocation5 + $0x520] sm:$0xff]
    %v146 = vld [vmem:[#allocation5 + $0x540] sm:$0xff]
    %v147 = vld [vmem:[#allocation5 + $0x548] sm:$0xff]
    %v148 = vld [vmem:[#allocation5 + $0x550] sm:$0xff]
    %v149 = vld [vmem:[#allocation5 + $0x570] sm:$0xff]
    %v150 = vld [vmem:[#allocation5 + $0x578] sm:$0xff]
    %v151 = vld [vmem:[#allocation5 + $0x580] sm:$0xff]
    %v152 = vld [vmem:[#allocation5 + $0x5a0] sm:$0xff]
    %v153 = vld [vmem:[#allocation5 + $0x5a8] sm:$0xff]
    %v154 = vld [vmem:[#allocation5 + $0x5b0] sm:$0xff]
    %v155 = vld [vmem:[#allocation5 + $0x5d0] sm:$0xff]
    %v156 = vld [vmem:[#allocation5 + $0x5d8] sm:$0xff]
    %v157 = vld [vmem:[#allocation5 + $0x5e0] sm:$0xff]
    %v254 = vunpack.c.l.b16 %v62
    %v255 = vunpack.c.h.b16 %v62
    %v256 = vunpack.c.l.b16 %v63
    %v257 = vunpack.c.h.b16 %v63
    %v258 = vunpack.c.l.b16 %v64
    %v259 = vunpack.c.h.b16 %v64
    %v260 = vunpack.c.l.b16 %v65
    %v261 = vunpack.c.h.b16 %v65
    %v262 = vunpack.c.l.b16 %v66
    %v263 = vunpack.c.h.b16 %v66
    %v264 = vunpack.c.l.b16 %v67
    %v265 = vunpack.c.h.b16 %v67
    %v266 = vunpack.c.l.b16 %v68
    %v267 = vunpack.c.h.b16 %v68
    %v268 = vunpack.c.l.b16 %v69
    %v269 = vunpack.c.h.b16 %v69
    %v270 = vunpack.c.l.b16 %v70
    %v271 = vunpack.c.h.b16 %v70
    %v272 = vunpack.c.l.b16 %v71
    %v273 = vunpack.c.h.b16 %v71
    %v274 = vunpack.c.l.b16 %v72
    %v275 = vunpack.c.h.b16 %v72
    %v276 = vunpack.c.l.b16 %v73
    %v277 = vunpack.c.h.b16 %v73
    %v278 = vunpack.c.l.b16 %v74
    %v279 = vunpack.c.h.b16 %v74
    %v280 = vunpack.c.l.b16 %v75
    %v281 = vunpack.c.h.b16 %v75
    %v282 = vunpack.c.l.b16 %v76
    %v283 = vunpack.c.h.b16 %v76
    %v284 = vunpack.c.l.b16 %v77
    %v285 = vunpack.c.h.b16 %v77
    %v286 = vunpack.c.l.b16 %v78
    %v287 = vunpack.c.h.b16 %v78
    %v288 = vunpack.c.l.b16 %v79
    %v289 = vunpack.c.h.b16 %v79
    %v290 = vunpack.c.l.b16 %v80
    %v291 = vunpack.c.h.b16 %v80
    %v292 = vunpack.c.l.b16 %v81
    %v293 = vunpack.c.h.b16 %v81
    %v294 = vunpack.c.l.b16 %v82
    %v295 = vunpack.c.h.b16 %v82
    %v296 = vunpack.c.l.b16 %v83
    %v297 = vunpack.c.h.b16 %v83
    %v298 = vunpack.c.l.b16 %v84
    %v299 = vunpack.c.h.b16 %v84
    %v300 = vunpack.c.l.b16 %v85
    %v301 = vunpack.c.h.b16 %v85
    %v302 = vunpack.c.l.b16 %v86
    %v303 = vunpack.c.h.b16 %v86
    %v304 = vunpack.c.l.b16 %v87
    %v305 = vunpack.c.h.b16 %v87
    %v306 = vunpack.c.l.b16 %v88
    %v307 = vunpack.c.h.b16 %v88
    %v308 = vunpack.c.l.b16 %v89
    %v309 = vunpack.c.h.b16 %v89
    %v310 = vunpack.c.l.b16 %v90
    %v311 = vunpack.c.h.b16 %v90
    %v312 = vunpack.c.l.b16 %v91
    %v313 = vunpack.c.h.b16 %v91
    %v314 = vunpack.c.l.b16 %v92
    %v315 = vunpack.c.h.b16 %v92
    %v316 = vunpack.c.l.b16 %v93
    %v317 = vunpack.c.h.b16 %v93
    %v318 = vunpack.c.l.b16 %v94
    %v319 = vunpack.c.h.b16 %v94
    %v320 = vunpack.c.l.b16 %v95
    %v321 = vunpack.c.h.b16 %v95
    %v322 = vunpack.c.l.b16 %v96
    %v323 = vunpack.c.h.b16 %v96
    %v324 = vunpack.c.l.b16 %v97
    %v325 = vunpack.c.h.b16 %v97
    %v326 = vunpack.c.l.b16 %v98
    %v327 = vunpack.c.h.b16 %v98
    %v328 = vunpack.c.l.b16 %v99
    %v329 = vunpack.c.h.b16 %v99
    %v330 = vunpack.c.l.b16 %v100
    %v331 = vunpack.c.h.b16 %v100
    %v332 = vunpack.c.l.b16 %v101
    %v333 = vunpack.c.h.b16 %v101
    %v334 = vunpack.c.l.b16 %v102
    %v335 = vunpack.c.h.b16 %v102
    %v336 = vunpack.c.l.b16 %v103
    %v337 = vunpack.c.h.b16 %v103
    %v338 = vunpack.c.l.b16 %v104
    %v339 = vunpack.c.h.b16 %v104
    %v340 = vunpack.c.l.b16 %v105
    %v341 = vunpack.c.h.b16 %v105
    %v342 = vunpack.c.l.b16 %v106
    %v343 = vunpack.c.h.b16 %v106
    %v344 = vunpack.c.l.b16 %v107
    %v345 = vunpack.c.h.b16 %v107
    %v346 = vunpack.c.l.b16 %v108
    %v347 = vunpack.c.h.b16 %v108
    %v348 = vunpack.c.l.b16 %v109
    %v349 = vunpack.c.h.b16 %v109
    %v350 = vunpack.c.l.b16 %v110
    %v351 = vunpack.c.h.b16 %v110
    %v352 = vunpack.c.l.b16 %v111
    %v353 = vunpack.c.h.b16 %v111
    %v354 = vunpack.c.l.b16 %v112
    %v355 = vunpack.c.h.b16 %v112
    %v356 = vunpack.c.l.b16 %v113
    %v357 = vunpack.c.h.b16 %v113
    %v358 = vunpack.c.l.b16 %v114
    %v359 = vunpack.c.h.b16 %v114
    %v360 = vunpack.c.l.b16 %v115
    %v361 = vunpack.c.h.b16 %v115
    %v362 = vunpack.c.l.b16 %v116
    %v363 = vunpack.c.h.b16 %v116
    %v364 = vunpack.c.l.b16 %v117
    %v365 = vunpack.c.h.b16 %v117
    %v366 = vunpack.c.l.b16 %v118
    %v367 = vunpack.c.h.b16 %v118
    %v368 = vunpack.c.l.b16 %v119
    %v369 = vunpack.c.h.b16 %v119
    %v370 = vunpack.c.l.b16 %v120
    %v371 = vunpack.c.h.b16 %v120
    %v372 = vunpack.c.l.b16 %v121
    %v373 = vunpack.c.h.b16 %v121
    %v374 = vunpack.c.l.b16 %v122
    %v375 = vunpack.c.h.b16 %v122
    %v376 = vunpack.c.l.b16 %v123
    %v377 = vunpack.c.h.b16 %v123
    %v378 = vunpack.c.l.b16 %v124
    %v379 = vunpack.c.h.b16 %v124
    %v380 = vunpack.c.l.b16 %v125
    %v381 = vunpack.c.h.b16 %v125
    %v382 = vunpack.c.l.b16 %v126
    %v383 = vunpack.c.h.b16 %v126
    %v384 = vunpack.c.l.b16 %v127
    %v385 = vunpack.c.h.b16 %v127
    %v386 = vunpack.c.l.b16 %v128
    %v387 = vunpack.c.h.b16 %v128
    %v388 = vunpack.c.l.b16 %v129
    %v389 = vunpack.c.h.b16 %v129
    %v390 = vunpack.c.l.b16 %v130
    %v391 = vunpack.c.h.b16 %v130
    %v392 = vunpack.c.l.b16 %v131
    %v393 = vunpack.c.h.b16 %v131
    %v394 = vunpack.c.l.b16 %v132
    %v395 = vunpack.c.h.b16 %v132
    %v396 = vunpack.c.l.b16 %v133
    %v397 = vunpack.c.h.b16 %v133
    %v398 = vunpack.c.l.b16 %v134
    %v399 = vunpack.c.h.b16 %v134
    %v400 = vunpack.c.l.b16 %v135
    %v401 = vunpack.c.h.b16 %v135
    %v402 = vunpack.c.l.b16 %v136
    %v403 = vunpack.c.h.b16 %v136
    %v404 = vunpack.c.l.b16 %v137
    %v405 = vunpack.c.h.b16 %v137
    %v406 = vunpack.c.l.b16 %v138
    %v407 = vunpack.c.h.b16 %v138
    %v408 = vunpack.c.l.b16 %v139
    %v409 = vunpack.c.h.b16 %v139
    %v410 = vunpack.c.l.b16 %v140
    %v411 = vunpack.c.h.b16 %v140
    %v412 = vunpack.c.l.b16 %v141
    %v413 = vunpack.c.h.b16 %v141
    %v414 = vunpack.c.l.b16 %v142
    %v415 = vunpack.c.h.b16 %v142
    %v416 = vunpack.c.l.b16 %v143
    %v417 = vunpack.c.h.b16 %v143
    %v418 = vunpack.c.l.b16 %v144
    %v419 = vunpack.c.h.b16 %v144
    %v420 = vunpack.c.l.b16 %v145
    %v421 = vunpack.c.h.b16 %v145
    %v422 = vunpack.c.l.b16 %v146
    %v423 = vunpack.c.h.b16 %v146
    %v424 = vunpack.c.l.b16 %v147
    %v425 = vunpack.c.h.b16 %v147
    %v426 = vunpack.c.l.b16 %v148
    %v427 = vunpack.c.h.b16 %v148
    %v428 = vunpack.c.l.b16 %v149
    %v429 = vunpack.c.h.b16 %v149
    %v430 = vunpack.c.l.b16 %v150
    %v431 = vunpack.c.h.b16 %v150
    %v432 = vunpack.c.l.b16 %v151
    %v433 = vunpack.c.h.b16 %v151
    %v434 = vunpack.c.l.b16 %v152
    %v435 = vunpack.c.h.b16 %v152
    %v436 = vunpack.c.l.b16 %v153
    %v437 = vunpack.c.h.b16 %v153
    %v438 = vunpack.c.l.b16 %v154
    %v439 = vunpack.c.h.b16 %v154
    %v440 = vunpack.c.l.b16 %v155
    %v441 = vunpack.c.h.b16 %v155
    %v442 = vunpack.c.l.b16 %v156
    %v443 = vunpack.c.h.b16 %v156
    %v444 = vunpack.c.l.b16 %v157
    %v445 = vunpack.c.h.b16 %v157
    %v446 = vpack.c.b16 %v260, %v254
    %v447 = vpack.c.b16 %v261, %v255
    %v448 = vpack.c.b16 %v262, %v256
    %v449 = vpack.c.b16 %v263, %v257
    %v450 = vpack.c.b16 %v264, %v258
    %v451 = vpack.c.b16 %v265, %v259
    %v452 = vpack.c.b16 %v272, %v266
    %v453 = vpack.c.b16 %v273, %v267
    %v454 = vpack.c.b16 %v274, %v268
    %v455 = vpack.c.b16 %v275, %v269
    %v456 = vpack.c.b16 %v276, %v270
    %v457 = vpack.c.b16 %v277, %v271
    %v458 = vpack.c.b16 %v284, %v278
    %v459 = vpack.c.b16 %v285, %v279
    %v460 = vpack.c.b16 %v286, %v280
    %v461 = vpack.c.b16 %v287, %v281
    %v462 = vpack.c.b16 %v288, %v282
    %v463 = vpack.c.b16 %v289, %v283
    %v464 = vpack.c.b16 %v296, %v290
    %v465 = vpack.c.b16 %v297, %v291
    %v466 = vpack.c.b16 %v298, %v292
    %v467 = vpack.c.b16 %v299, %v293
    %v468 = vpack.c.b16 %v300, %v294
    %v469 = vpack.c.b16 %v301, %v295
    %v470 = vpack.c.b16 %v308, %v302
    %v471 = vpack.c.b16 %v309, %v303
    %v472 = vpack.c.b16 %v310, %v304
    %v473 = vpack.c.b16 %v311, %v305
    %v474 = vpack.c.b16 %v312, %v306
    %v475 = vpack.c.b16 %v313, %v307
    %v476 = vpack.c.b16 %v320, %v314
    %v477 = vpack.c.b16 %v321, %v315
    %v478 = vpack.c.b16 %v322, %v316
    %v479 = vpack.c.b16 %v323, %v317
    %v480 = vpack.c.b16 %v324, %v318
    %v481 = vpack.c.b16 %v325, %v319
    %v482 = vpack.c.b16 %v332, %v326
    %v483 = vpack.c.b16 %v333, %v327
    %v484 = vpack.c.b16 %v334, %v328
    %v485 = vpack.c.b16 %v335, %v329
    %v486 = vpack.c.b16 %v336, %v330
    %v487 = vpack.c.b16 %v337, %v331
    %v488 = vpack.c.b16 %v344, %v338
    %v489 = vpack.c.b16 %v345, %v339
    %v490 = vpack.c.b16 %v346, %v340
    %v491 = vpack.c.b16 %v347, %v341
    %v492 = vpack.c.b16 %v348, %v342
    %v493 = vpack.c.b16 %v349, %v343
    %v494 = vpack.c.b16 %v356, %v350
    %v495 = vpack.c.b16 %v357, %v351
    %v496 = vpack.c.b16 %v358, %v352
    %v497 = vpack.c.b16 %v359, %v353
    %v498 = vpack.c.b16 %v360, %v354
    %v499 = vpack.c.b16 %v361, %v355
    %v500 = vpack.c.b16 %v368, %v362
    %v501 = vpack.c.b16 %v369, %v363
    %v502 = vpack.c.b16 %v370, %v364
    %v503 = vpack.c.b16 %v371, %v365
    %v504 = vpack.c.b16 %v372, %v366
    %v505 = vpack.c.b16 %v373, %v367
    %v506 = vpack.c.b16 %v380, %v374
    %v507 = vpack.c.b16 %v381, %v375
    %v508 = vpack.c.b16 %v382, %v376
    %v509 = vpack.c.b16 %v383, %v377
    %v510 = vpack.c.b16 %v384, %v378
    %v511 = vpack.c.b16 %v385, %v379
    %v512 = vpack.c.b16 %v392, %v386
    %v513 = vpack.c.b16 %v393, %v387
    %v514 = vpack.c.b16 %v394, %v388
    %v515 = vpack.c.b16 %v395, %v389
    %v516 = vpack.c.b16 %v396, %v390
    %v517 = vpack.c.b16 %v397, %v391
    %v518 = vpack.c.b16 %v404, %v398
    %v519 = vpack.c.b16 %v405, %v399
    %v520 = vpack.c.b16 %v406, %v400
    %v521 = vpack.c.b16 %v407, %v401
    %v522 = vpack.c.b16 %v408, %v402
    %v523 = vpack.c.b16 %v409, %v403
    %v524 = vpack.c.b16 %v416, %v410
    %v525 = vpack.c.b16 %v417, %v411
    %v526 = vpack.c.b16 %v418, %v412
    %v527 = vpack.c.b16 %v419, %v413
    %v528 = vpack.c.b16 %v420, %v414
    %v529 = vpack.c.b16 %v421, %v415
    %v530 = vpack.c.b16 %v428, %v422
    %v531 = vpack.c.b16 %v429, %v423
    %v532 = vpack.c.b16 %v430, %v424
    %v533 = vpack.c.b16 %v431, %v425
    %v534 = vpack.c.b16 %v432, %v426
    %v535 = vpack.c.b16 %v433, %v427
    %v536 = vpack.c.b16 %v440, %v434
    %v537 = vpack.c.b16 %v441, %v435
    %v538 = vpack.c.b16 %v442, %v436
    %v539 = vpack.c.b16 %v443, %v437
    %v540 = vpack.c.b16 %v444, %v438
    %v541 = vpack.c.b16 %v445, %v439
    %638 = vmatprep.subr.bf16.mxu0 %v447
    %639 = vmatpush1.bf16.msra.mxu0 %v446
    %640 = vmatprep.subr.bf16.mxu0 %v453
    %641 = vmatpush1.bf16.msra.mxu0 %v452
    %642 = vmatprep.subr.bf16.mxu0 %v459
    %643 = vmatpush1.bf16.msra.mxu0 %v458
    %644 = vmatprep.subr.bf16.mxu0 %v465
    %645 = vmatpush1.bf16.msra.mxu0 %v464
    %646 = vmatprep.subr.bf16.mxu0 %v471
    %647 = vmatpush1.bf16.msra.mxu0 %v470
    %648 = vmatprep.subr.bf16.mxu0 %v477
    %649 = vmatpush1.bf16.msra.mxu0 %v476
    %650 = vmatprep.subr.bf16.mxu0 %v483
    %651 = vmatpush1.bf16.msra.mxu0 %v482
    %652 = vmatprep.subr.bf16.mxu0 %v489
    %653 = vmatpush1.bf16.msra.mxu0 %v488
    %654 = vmatprep.subr.bf16.mxu0 %v495
    %655 = vmatpush1.bf16.msra.mxu0 %v494
    %656 = vmatprep.subr.bf16.mxu0 %v501
    %657 = vmatpush1.bf16.msra.mxu0 %v500
    %658 = vmatprep.subr.bf16.mxu0 %v507
    %659 = vmatpush1.bf16.msra.mxu0 %v506
    %660 = vmatprep.subr.bf16.mxu0 %v513
    %661 = vmatpush1.bf16.msra.mxu0 %v512
    %662 = vmatprep.subr.bf16.mxu0 %v519
    %663 = vmatpush1.bf16.msra.mxu0 %v518
    %664 = vmatprep.subr.bf16.mxu0 %v525
    %665 = vmatpush1.bf16.msra.mxu0 %v524
    %666 = vmatprep.subr.bf16.mxu0 %v531
    %667 = vmatpush1.bf16.msra.mxu0 %v530
    %668 = vmatprep.subr.bf16.mxu0 %v537
    %669 = vmatpush1.bf16.msra.mxu0 %v536
    %670 = vmatprep.mubr.bf16.mxu0 %v61
    %671 = vmatmul.mubr.bf16.gmra.mrb[0].mxu0 %v60
    %v672 = vpop.f32.mrb[0].mxu0
    %v673 = vadd.f32 0.0, %v672
    %v674 = vpop.f32.mrb[0].mxu0
    %v675 = vadd.f32 0.0, %v674
    %v676 = vpop.f32.mrb[0].mxu0
    %v677 = vadd.f32 0.0, %v676
    %v678 = vpop.f32.mrb[0].mxu0
    %v679 = vadd.f32 0.0, %v678
    %680 = vdwg.mxu0
    %681 = vmatprep.subr.bf16.mxu0 %v449
    %682 = vmatpush1.bf16.msra.mxu0 %v448
    %683 = vmatprep.subr.bf16.mxu0 %v455
    %684 = vmatpush1.bf16.msra.mxu0 %v454
    %685 = vmatprep.subr.bf16.mxu0 %v461
    %686 = vmatpush1.bf16.msra.mxu0 %v460
    %687 = vmatprep.subr.bf16.mxu0 %v467
    %688 = vmatpush1.bf16.msra.mxu0 %v466
    %689 = vmatprep.subr.bf16.mxu0 %v473
    %690 = vmatpush1.bf16.msra.mxu0 %v472
    %691 = vmatprep.subr.bf16.mxu0 %v479
    %692 = vmatpush1.bf16.msra.mxu0 %v478
    %693 = vmatprep.subr.bf16.mxu0 %v485
    %694 = vmatpush1.bf16.msra.mxu0 %v484
    %695 = vmatprep.subr.bf16.mxu0 %v491
    %696 = vmatpush1.bf16.msra.mxu0 %v490
    %697 = vmatprep.subr.bf16.mxu0 %v497
    %698 = vmatpush1.bf16.msra.mxu0 %v496
    %699 = vmatprep.subr.bf16.mxu0 %v503
    %700 = vmatpush1.bf16.msra.mxu0 %v502
    %701 = vmatprep.subr.bf16.mxu0 %v509
    %702 = vmatpush1.bf16.msra.mxu0 %v508
    %703 = vmatprep.subr.bf16.mxu0 %v515
    %704 = vmatpush1.bf16.msra.mxu0 %v514
    %705 = vmatprep.subr.bf16.mxu0 %v521
    %706 = vmatpush1.bf16.msra.mxu0 %v520
    %707 = vmatprep.subr.bf16.mxu0 %v527
    %708 = vmatpush1.bf16.msra.mxu0 %v526
    %709 = vmatprep.subr.bf16.mxu0 %v533
    %710 = vmatpush1.bf16.msra.mxu0 %v532
    %711 = vmatprep.subr.bf16.mxu0 %v539
    %712 = vmatpush1.bf16.msra.mxu0 %v538
    %713 = vmatprep.mubr.bf16.mxu0 %v61
    %714 = vmatmul.mubr.bf16.gmra.mrb[0].mxu0 %v60
    %v715 = vpop.f32.mrb[0].mxu0
    %v716 = vadd.f32 0.0, %v715
    %v717 = vpop.f32.mrb[0].mxu0
    %v718 = vadd.f32 0.0, %v717
    %v719 = vpop.f32.mrb[0].mxu0
    %v720 = vadd.f32 0.0, %v719
    %v721 = vpop.f32.mrb[0].mxu0
    %v722 = vadd.f32 0.0, %v721
    %723 = vdwg.mxu0
    %724 = vmatprep.subr.bf16.mxu0 %v451
    %725 = vmatpush1.bf16.msra.mxu0 %v450
    %726 = vmatprep.subr.bf16.mxu0 %v457
    %727 = vmatpush1.bf16.msra.mxu0 %v456
    %728 = vmatprep.subr.bf16.mxu0 %v463
    %729 = vmatpush1.bf16.msra.mxu0 %v462
    %730 = vmatprep.subr.bf16.mxu0 %v469
    %731 = vmatpush1.bf16.msra.mxu0 %v468
    %732 = vmatprep.subr.bf16.mxu0 %v475
    %733 = vmatpush1.bf16.msra.mxu0 %v474
    %734 = vmatprep.subr.bf16.mxu0 %v481
    %735 = vmatpush1.bf16.msra.mxu0 %v480
    %736 = vmatprep.subr.bf16.mxu0 %v487
    %737 = vmatpush1.bf16.msra.mxu0 %v486
    %738 = vmatprep.subr.bf16.mxu0 %v493
    %739 = vmatpush1.bf16.msra.mxu0 %v492
    %740 = vmatprep.subr.bf16.mxu0 %v499
    %741 = vmatpush1.bf16.msra.mxu0 %v498
    %742 = vmatprep.subr.bf16.mxu0 %v505
    %743 = vmatpush1.bf16.msra.mxu0 %v504
    %744 = vmatprep.subr.bf16.mxu0 %v511
    %745 = vmatpush1.bf16.msra.mxu0 %v510
    %746 = vmatprep.subr.bf16.mxu0 %v517
    %747 = vmatpush1.bf16.msra.mxu0 %v516
    %748 = vmatprep.subr.bf16.mxu0 %v523
    %749 = vmatpush1.bf16.msra.mxu0 %v522
    %750 = vmatprep.subr.bf16.mxu0 %v529
    %751 = vmatpush1.bf16.msra.mxu0 %v528
    %752 = vmatprep.subr.bf16.mxu0 %v535
    %753 = vmatpush1.bf16.msra.mxu0 %v534
    %754 = vmatprep.subr.bf16.mxu0 %v541
    %755 = vmatpush1.bf16.msra.mxu0 %v540
    %756 = vmatprep.mubr.bf16.mxu0 %v61
    %757 = vmatmul.mubr.bf16.gmra.mrb[0].mxu0 %v60
    %v758 = vpop.f32.mrb[0].mxu0
    %v759 = vadd.f32 0.0, %v758
    %v760 = vpop.f32.mrb[0].mxu0
    %v761 = vadd.f32 0.0, %v760
    %v762 = vpop.f32.mrb[0].mxu0
    %v763 = vadd.f32 0.0, %v762
    %v764 = vpop.f32.mrb[0].mxu0
    %v765 = vadd.f32 0.0, %v764
    %766 = vdwg.mxu0
    %v767 = vxor.u32 %v673, 2147483648
    %v768 = vxor.u32 %v675, 2147483648
    %v769 = vxor.u32 %v716, 2147483648
    %v770 = vxor.u32 %v718, 2147483648
    %v771 = vxor.u32 %v759, 2147483648
    %v772 = vxor.u32 %v761, 2147483648
    %v773 = vxor.u32 %v677, 2147483648
    %v774 = vxor.u32 %v679, 2147483648
    %v775 = vxor.u32 %v720, 2147483648
    %v776 = vxor.u32 %v722, 2147483648
    %v777 = vxor.u32 %v763, 2147483648
    %v778 = vxor.u32 %v765, 2147483648
    %v779 = vmul.f32 %v767, 1.442695
    %v780 = vpow.pop %v779
    %v781 = vmul.f32 %v768, 1.442695
    %v782 = vpow.pop %v781
    %v783 = vmul.f32 %v769, 1.442695
    %v784 = vpow.pop %v783
    %v785 = vmul.f32 %v770, 1.442695
    %v786 = vpow.pop %v785
    %v787 = vmul.f32 %v771, 1.442695
    %v788 = vpow.pop %v787
    %v789 = vmul.f32 %v772, 1.442695
    %v790 = vpow.pop %v789
    %v791 = vmul.f32 %v773, 1.442695
    %v792 = vpow.pop %v791
    %v793 = vmul.f32 %v774, 1.442695
    %v794 = vpow.pop %v793
    %v795 = vmul.f32 %v775, 1.442695
    %v796 = vpow.pop %v795
    %v797 = vmul.f32 %v776, 1.442695
    %v798 = vpow.pop %v797
    %v799 = vmul.f32 %v777, 1.442695
    %v800 = vpow.pop %v799
    %v801 = vmul.f32 %v778, 1.442695
    %v802 = vpow.pop %v801
    %v803 = vadd.f32 %v780, 1.0
    %v804 = vadd.f32 %v782, 1.0
    %v805 = vadd.f32 %v784, 1.0
    %v806 = vadd.f32 %v786, 1.0
    %v807 = vadd.f32 %v788, 1.0
    %v808 = vadd.f32 %v790, 1.0
    %v809 = vadd.f32 %v792, 1.0
    %v810 = vadd.f32 %v794, 1.0
    %v811 = vadd.f32 %v796, 1.0
    %v812 = vadd.f32 %v798, 1.0
    %v813 = vadd.f32 %v800, 1.0
    %v814 = vadd.f32 %v802, 1.0
    %v815 = vrcp.pop %v803
    %v816 = vmul.f32 1.0, %v815
    %v817 = vrcp.pop %v804
    %v818 = vmul.f32 1.0, %v817
    %v819 = vrcp.pop %v805
    %v820 = vmul.f32 1.0, %v819
    %v821 = vrcp.pop %v806
    %v822 = vmul.f32 1.0, %v821
    %v823 = vrcp.pop %v807
    %v824 = vmul.f32 1.0, %v823
    %v825 = vrcp.pop %v808
    %v826 = vmul.f32 1.0, %v825
    %v827 = vrcp.pop %v809
    %v828 = vmul.f32 1.0, %v827
    %v829 = vrcp.pop %v810
    %v830 = vmul.f32 1.0, %v829
    %v831 = vrcp.pop %v811
    %v832 = vmul.f32 1.0, %v831
    %v833 = vrcp.pop %v812
    %v834 = vmul.f32 1.0, %v833
    %v835 = vrcp.pop %v813
    %v836 = vmul.f32 1.0, %v835
    %v837 = vrcp.pop %v814
    %v838 = vmul.f32 1.0, %v837
    %v839 = vmul.f32 %v673, %v816
    %v840 = vmul.f32 %v675, %v818
    %v841 = vmul.f32 %v716, %v820
    %v842 = vmul.f32 %v718, %v822
    %v843 = vmul.f32 %v759, %v824
    %v844 = vmul.f32 %v761, %v826
    %v845 = vmul.f32 %v677, %v828
    %v846 = vmul.f32 %v679, %v830
    %v847 = vmul.f32 %v720, %v832
    %v848 = vmul.f32 %v722, %v834
    %v849 = vmul.f32 %v763, %v836
    %v850 = vmul.f32 %v765, %v838
    %v851 = vld [vmem:[#allocation5 + $0x18] sm:$0xff]
    %v852 = vld [vmem:[#allocation5 + $0x20] sm:$0xff]
    %v853 = vld [vmem:[#allocation5 + $0x28] sm:$0xff]
    %v854 = vld [vmem:[#allocation5 + $0x48] sm:$0xff]
    %v855 = vld [vmem:[#allocation5 + $0x50] sm:$0xff]
    %v856 = vld [vmem:[#allocation5 + $0x58] sm:$0xff]
    %v857 = vld [vmem:[#allocation5 + $0x78] sm:$0xff]
    %v858 = vld [vmem:[#allocation5 + $0x80] sm:$0xff]
    %v859 = vld [vmem:[#allocation5 + $0x88] sm:$0xff]
    %v860 = vld [vmem:[#allocation5 + $0xa8] sm:$0xff]
    %v861 = vld [vmem:[#allocation5 + $0xb0] sm:$0xff]
    %v862 = vld [vmem:[#allocation5 + $0xb8] sm:$0xff]
    %v863 = vld [vmem:[#allocation5 + $0xd8] sm:$0xff]
    %v864 = vld [vmem:[#allocation5 + $0xe0] sm:$0xff]
    %v865 = vld [vmem:[#allocation5 + $0xe8] sm:$0xff]
    %v866 = vld [vmem:[#allocation5 + $0x108] sm:$0xff]
    %v867 = vld [vmem:[#allocation5 + $0x110] sm:$0xff]
    %v868 = vld [vmem:[#allocation5 + $0x118] sm:$0xff]
    %v869 = vld [vmem:[#allocation5 + $0x138] sm:$0xff]
    %v870 = vld [vmem:[#allocation5 + $0x140] sm:$0xff]
    %v871 = vld [vmem:[#allocation5 + $0x148] sm:$0xff]
    %v872 = vld [vmem:[#allocation5 + $0x168] sm:$0xff]
    %v873 = vld [vmem:[#allocation5 + $0x170] sm:$0xff]
    %v874 = vld [vmem:[#allocation5 + $0x178] sm:$0xff]
    %v875 = vld [vmem:[#allocation5 + $0x198] sm:$0xff]
    %v876 = vld [vmem:[#allocation5 + $0x1a0] sm:$0xff]
    %v877 = vld [vmem:[#allocation5 + $0x1a8] sm:$0xff]
    %v878 = vld [vmem:[#allocation5 + $0x1c8] sm:$0xff]
    %v879 = vld [vmem:[#allocation5 + $0x1d0] sm:$0xff]
    %v880 = vld [vmem:[#allocation5 + $0x1d8] sm:$0xff]
    %v881 = vld [vmem:[#allocation5 + $0x1f8] sm:$0xff]
    %v882 = vld [vmem:[#allocation5 + $0x200] sm:$0xff]
    %v883 = vld [vmem:[#allocation5 + $0x208] sm:$0xff]
    %v884 = vld [vmem:[#allocation5 + $0x228] sm:$0xff]
    %v885 = vld [vmem:[#allocation5 + $0x230] sm:$0xff]
    %v886 = vld [vmem:[#allocation5 + $0x238] sm:$0xff]
    %v887 = vld [vmem:[#allocation5 + $0x258] sm:$0xff]
    %v888 = vld [vmem:[#allocation5 + $0x260] sm:$0xff]
    %v889 = vld [vmem:[#allocation5 + $0x268] sm:$0xff]
    %v890 = vld [vmem:[#allocation5 + $0x288] sm:$0xff]
    %v891 = vld [vmem:[#allocation5 + $0x290] sm:$0xff]
    %v892 = vld [vmem:[#allocation5 + $0x298] sm:$0xff]
    %v893 = vld [vmem:[#allocation5 + $0x2b8] sm:$0xff]
    %v894 = vld [vmem:[#allocation5 + $0x2c0] sm:$0xff]
    %v895 = vld [vmem:[#allocation5 + $0x2c8] sm:$0xff]
    %v896 = vld [vmem:[#allocation5 + $0x2e8] sm:$0xff]
    %v897 = vld [vmem:[#allocation5 + $0x2f0] sm:$0xff]
    %v898 = vld [vmem:[#allocation5 + $0x2f8] sm:$0xff]
    %v899 = vld [vmem:[#allocation5 + $0x318] sm:$0xff]
    %v900 = vld [vmem:[#allocation5 + $0x320] sm:$0xff]
    %v901 = vld [vmem:[#allocation5 + $0x328] sm:$0xff]
    %v902 = vld [vmem:[#allocation5 + $0x348] sm:$0xff]
    %v903 = vld [vmem:[#allocation5 + $0x350] sm:$0xff]
    %v904 = vld [vmem:[#allocation5 + $0x358] sm:$0xff]
    %v905 = vld [vmem:[#allocation5 + $0x378] sm:$0xff]
    %v906 = vld [vmem:[#allocation5 + $0x380] sm:$0xff]
    %v907 = vld [vmem:[#allocation5 + $0x388] sm:$0xff]
    %v908 = vld [vmem:[#allocation5 + $0x3a8] sm:$0xff]
    %v909 = vld [vmem:[#allocation5 + $0x3b0] sm:$0xff]
    %v910 = vld [vmem:[#allocation5 + $0x3b8] sm:$0xff]
    %v911 = vld [vmem:[#allocation5 + $0x3d8] sm:$0xff]
    %v912 = vld [vmem:[#allocation5 + $0x3e0] sm:$0xff]
    %v913 = vld [vmem:[#allocation5 + $0x3e8] sm:$0xff]
    %v914 = vld [vmem:[#allocation5 + $0x408] sm:$0xff]
    %v915 = vld [vmem:[#allocation5 + $0x410] sm:$0xff]
    %v916 = vld [vmem:[#allocation5 + $0x418] sm:$0xff]
    %v917 = vld [vmem:[#allocation5 + $0x438] sm:$0xff]
    %v918 = vld [vmem:[#allocation5 + $0x440] sm:$0xff]
    %v919 = vld [vmem:[#allocation5 + $0x448] sm:$0xff]
    %v920 = vld [vmem:[#allocation5 + $0x468] sm:$0xff]
    %v921 = vld [vmem:[#allocation5 + $0x470] sm:$0xff]
    %v922 = vld [vmem:[#allocation5 + $0x478] sm:$0xff]
    %v923 = vld [vmem:[#allocation5 + $0x498] sm:$0xff]
    %v924 = vld [vmem:[#allocation5 + $0x4a0] sm:$0xff]
    %v925 = vld [vmem:[#allocation5 + $0x4a8] sm:$0xff]
    %v926 = vld [vmem:[#allocation5 + $0x4c8] sm:$0xff]
    %v927 = vld [vmem:[#allocation5 + $0x4d0] sm:$0xff]
    %v928 = vld [vmem:[#allocation5 + $0x4d8] sm:$0xff]
    %v929 = vld [vmem:[#allocation5 + $0x4f8] sm:$0xff]
    %v930 = vld [vmem:[#allocation5 + $0x500] sm:$0xff]
    %v931 = vld [vmem:[#allocation5 + $0x508] sm:$0xff]
    %v932 = vld [vmem:[#allocation5 + $0x528] sm:$0xff]
    %v933 = vld [vmem:[#allocation5 + $0x530] sm:$0xff]
    %v934 = vld [vmem:[#allocation5 + $0x538] sm:$0xff]
    %v935 = vld [vmem:[#allocation5 + $0x558] sm:$0xff]
    %v936 = vld [vmem:[#allocation5 + $0x560] sm:$0xff]
    %v937 = vld [vmem:[#allocation5 + $0x568] sm:$0xff]
    %v938 = vld [vmem:[#allocation5 + $0x588] sm:$0xff]
    %v939 = vld [vmem:[#allocation5 + $0x590] sm:$0xff]
    %v940 = vld [vmem:[#allocation5 + $0x598] sm:$0xff]
    %v941 = vld [vmem:[#allocation5 + $0x5b8] sm:$0xff]
    %v942 = vld [vmem:[#allocation5 + $0x5c0] sm:$0xff]
    %v943 = vld [vmem:[#allocation5 + $0x5c8] sm:$0xff]
    %v944 = vld [vmem:[#allocation5 + $0x5e8] sm:$0xff]
    %v945 = vld [vmem:[#allocation5 + $0x5f0] sm:$0xff]
    %v946 = vld [vmem:[#allocation5 + $0x5f8] sm:$0xff]
    %v1043 = vunpack.c.l.b16 %v851
    %v1044 = vunpack.c.h.b16 %v851
    %v1045 = vunpack.c.l.b16 %v852
    %v1046 = vunpack.c.h.b16 %v852
    %v1047 = vunpack.c.l.b16 %v853
    %v1048 = vunpack.c.h.b16 %v853
    %v1049 = vunpack.c.l.b16 %v854
    %v1050 = vunpack.c.h.b16 %v854
    %v1051 = vunpack.c.l.b16 %v855
    %v1052 = vunpack.c.h.b16 %v855
    %v1053 = vunpack.c.l.b16 %v856
    %v1054 = vunpack.c.h.b16 %v856
    %v1055 = vunpack.c.l.b16 %v857
    %v1056 = vunpack.c.h.b16 %v857
    %v1057 = vunpack.c.l.b16 %v858
    %v1058 = vunpack.c.h.b16 %v858
    %v1059 = vunpack.c.l.b16 %v859
    %v1060 = vunpack.c.h.b16 %v859
    %v1061 = vunpack.c.l.b16 %v860
    %v1062 = vunpack.c.h.b16 %v860
    %v1063 = vunpack.c.l.b16 %v861
    %v1064 = vunpack.c.h.b16 %v861
    %v1065 = vunpack.c.l.b16 %v862
    %v1066 = vunpack.c.h.b16 %v862
    %v1067 = vunpack.c.l.b16 %v863
    %v1068 = vunpack.c.h.b16 %v863
    %v1069 = vunpack.c.l.b16 %v864
    %v1070 = vunpack.c.h.b16 %v864
    %v1071 = vunpack.c.l.b16 %v865
    %v1072 = vunpack.c.h.b16 %v865
    %v1073 = vunpack.c.l.b16 %v866
    %v1074 = vunpack.c.h.b16 %v866
    %v1075 = vunpack.c.l.b16 %v867
    %v1076 = vunpack.c.h.b16 %v867
    %v1077 = vunpack.c.l.b16 %v868
    %v1078 = vunpack.c.h.b16 %v868
    %v1079 = vunpack.c.l.b16 %v869
    %v1080 = vunpack.c.h.b16 %v869
    %v1081 = vunpack.c.l.b16 %v870
    %v1082 = vunpack.c.h.b16 %v870
    %v1083 = vunpack.c.l.b16 %v871
    %v1084 = vunpack.c.h.b16 %v871
    %v1085 = vunpack.c.l.b16 %v872
    %v1086 = vunpack.c.h.b16 %v872
    %v1087 = vunpack.c.l.b16 %v873
    %v1088 = vunpack.c.h.b16 %v873
    %v1089 = vunpack.c.l.b16 %v874
    %v1090 = vunpack.c.h.b16 %v874
    %v1091 = vunpack.c.l.b16 %v875
    %v1092 = vunpack.c.h.b16 %v875
    %v1093 = vunpack.c.l.b16 %v876
    %v1094 = vunpack.c.h.b16 %v876
    %v1095 = vunpack.c.l.b16 %v877
    %v1096 = vunpack.c.h.b16 %v877
    %v1097 = vunpack.c.l.b16 %v878
    %v1098 = vunpack.c.h.b16 %v878
    %v1099 = vunpack.c.l.b16 %v879
    %v1100 = vunpack.c.h.b16 %v879
    %v1101 = vunpack.c.l.b16 %v880
    %v1102 = vunpack.c.h.b16 %v880
    %v1103 = vunpack.c.l.b16 %v881
    %v1104 = vunpack.c.h.b16 %v881
    %v1105 = vunpack.c.l.b16 %v882
    %v1106 = vunpack.c.h.b16 %v882
    %v1107 = vunpack.c.l.b16 %v883
    %v1108 = vunpack.c.h.b16 %v883
    %v1109 = vunpack.c.l.b16 %v884
    %v1110 = vunpack.c.h.b16 %v884
    %v1111 = vunpack.c.l.b16 %v885
    %v1112 = vunpack.c.h.b16 %v885
    %v1113 = vunpack.c.l.b16 %v886
    %v1114 = vunpack.c.h.b16 %v886
    %v1115 = vunpack.c.l.b16 %v887
    %v1116 = vunpack.c.h.b16 %v887
    %v1117 = vunpack.c.l.b16 %v888
    %v1118 = vunpack.c.h.b16 %v888
    %v1119 = vunpack.c.l.b16 %v889
    %v1120 = vunpack.c.h.b16 %v889
    %v1121 = vunpack.c.l.b16 %v890
    %v1122 = vunpack.c.h.b16 %v890
    %v1123 = vunpack.c.l.b16 %v891
    %v1124 = vunpack.c.h.b16 %v891
    %v1125 = vunpack.c.l.b16 %v892
    %v1126 = vunpack.c.h.b16 %v892
    %v1127 = vunpack.c.l.b16 %v893
    %v1128 = vunpack.c.h.b16 %v893
    %v1129 = vunpack.c.l.b16 %v894
    %v1130 = vunpack.c.h.b16 %v894
    %v1131 = vunpack.c.l.b16 %v895
    %v1132 = vunpack.c.h.b16 %v895
    %v1133 = vunpack.c.l.b16 %v896
    %v1134 = vunpack.c.h.b16 %v896
    %v1135 = vunpack.c.l.b16 %v897
    %v1136 = vunpack.c.h.b16 %v897
    %v1137 = vunpack.c.l.b16 %v898
    %v1138 = vunpack.c.h.b16 %v898
    %v1139 = vunpack.c.l.b16 %v899
    %v1140 = vunpack.c.h.b16 %v899
    %v1141 = vunpack.c.l.b16 %v900
    %v1142 = vunpack.c.h.b16 %v900
    %v1143 = vunpack.c.l.b16 %v901
    %v1144 = vunpack.c.h.b16 %v901
    %v1145 = vunpack.c.l.b16 %v902
    %v1146 = vunpack.c.h.b16 %v902
    %v1147 = vunpack.c.l.b16 %v903
    %v1148 = vunpack.c.h.b16 %v903
    %v1149 = vunpack.c.l.b16 %v904
    %v1150 = vunpack.c.h.b16 %v904
    %v1151 = vunpack.c.l.b16 %v905
    %v1152 = vunpack.c.h.b16 %v905
    %v1153 = vunpack.c.l.b16 %v906
    %v1154 = vunpack.c.h.b16 %v906
    %v1155 = vunpack.c.l.b16 %v907
    %v1156 = vunpack.c.h.b16 %v907
    %v1157 = vunpack.c.l.b16 %v908
    %v1158 = vunpack.c.h.b16 %v908
    %v1159 = vunpack.c.l.b16 %v909
    %v1160 = vunpack.c.h.b16 %v909
    %v1161 = vunpack.c.l.b16 %v910
    %v1162 = vunpack.c.h.b16 %v910
    %v1163 = vunpack.c.l.b16 %v911
    %v1164 = vunpack.c.h.b16 %v911
    %v1165 = vunpack.c.l.b16 %v912
    %v1166 = vunpack.c.h.b16 %v912
    %v1167 = vunpack.c.l.b16 %v913
    %v1168 = vunpack.c.h.b16 %v913
    %v1169 = vunpack.c.l.b16 %v914
    %v1170 = vunpack.c.h.b16 %v914
    %v1171 = vunpack.c.l.b16 %v915
    %v1172 = vunpack.c.h.b16 %v915
    %v1173 = vunpack.c.l.b16 %v916
    %v1174 = vunpack.c.h.b16 %v916
    %v1175 = vunpack.c.l.b16 %v917
    %v1176 = vunpack.c.h.b16 %v917
    %v1177 = vunpack.c.l.b16 %v918
    %v1178 = vunpack.c.h.b16 %v918
    %v1179 = vunpack.c.l.b16 %v919
    %v1180 = vunpack.c.h.b16 %v919
    %v1181 = vunpack.c.l.b16 %v920
    %v1182 = vunpack.c.h.b16 %v920
    %v1183 = vunpack.c.l.b16 %v921
    %v1184 = vunpack.c.h.b16 %v921
    %v1185 = vunpack.c.l.b16 %v922
    %v1186 = vunpack.c.h.b16 %v922
    %v1187 = vunpack.c.l.b16 %v923
    %v1188 = vunpack.c.h.b16 %v923
    %v1189 = vunpack.c.l.b16 %v924
    %v1190 = vunpack.c.h.b16 %v924
    %v1191 = vunpack.c.l.b16 %v925
    %v1192 = vunpack.c.h.b16 %v925
    %v1193 = vunpack.c.l.b16 %v926
    %v1194 = vunpack.c.h.b16 %v926
    %v1195 = vunpack.c.l.b16 %v927
    %v1196 = vunpack.c.h.b16 %v927
    %v1197 = vunpack.c.l.b16 %v928
    %v1198 = vunpack.c.h.b16 %v928
    %v1199 = vunpack.c.l.b16 %v929
    %v1200 = vunpack.c.h.b16 %v929
    %v1201 = vunpack.c.l.b16 %v930
    %v1202 = vunpack.c.h.b16 %v930
    %v1203 = vunpack.c.l.b16 %v931
    %v1204 = vunpack.c.h.b16 %v931
    %v1205 = vunpack.c.l.b16 %v932
    %v1206 = vunpack.c.h.b16 %v932
    %v1207 = vunpack.c.l.b16 %v933
    %v1208 = vunpack.c.h.b16 %v933
    %v1209 = vunpack.c.l.b16 %v934
    %v1210 = vunpack.c.h.b16 %v934
    %v1211 = vunpack.c.l.b16 %v935
    %v1212 = vunpack.c.h.b16 %v935
    %v1213 = vunpack.c.l.b16 %v936
    %v1214 = vunpack.c.h.b16 %v936
    %v1215 = vunpack.c.l.b16 %v937
    %v1216 = vunpack.c.h.b16 %v937
    %v1217 = vunpack.c.l.b16 %v938
    %v1218 = vunpack.c.h.b16 %v938
    %v1219 = vunpack.c.l.b16 %v939
    %v1220 = vunpack.c.h.b16 %v939
    %v1221 = vunpack.c.l.b16 %v940
    %v1222 = vunpack.c.h.b16 %v940
    %v1223 = vunpack.c.l.b16 %v941
    %v1224 = vunpack.c.h.b16 %v941
    %v1225 = vunpack.c.l.b16 %v942
    %v1226 = vunpack.c.h.b16 %v942
    %v1227 = vunpack.c.l.b16 %v943
    %v1228 = vunpack.c.h.b16 %v943
    %v1229 = vunpack.c.l.b16 %v944
    %v1230 = vunpack.c.h.b16 %v944
    %v1231 = vunpack.c.l.b16 %v945
    %v1232 = vunpack.c.h.b16 %v945
    %v1233 = vunpack.c.l.b16 %v946
    %v1234 = vunpack.c.h.b16 %v946
    %v1235 = vpack.c.b16 %v1049, %v1043
    %v1236 = vpack.c.b16 %v1050, %v1044
    %v1237 = vpack.c.b16 %v1051, %v1045
    %v1238 = vpack.c.b16 %v1052, %v1046
    %v1239 = vpack.c.b16 %v1053, %v1047
    %v1240 = vpack.c.b16 %v1054, %v1048
    %v1241 = vpack.c.b16 %v1061, %v1055
    %v1242 = vpack.c.b16 %v1062, %v1056
    %v1243 = vpack.c.b16 %v1063, %v1057
    %v1244 = vpack.c.b16 %v1064, %v1058
    %v1245 = vpack.c.b16 %v1065, %v1059
    %v1246 = vpack.c.b16 %v1066, %v1060
    %v1247 = vpack.c.b16 %v1073, %v1067
    %v1248 = vpack.c.b16 %v1074, %v1068
    %v1249 = vpack.c.b16 %v1075, %v1069
    %v1250 = vpack.c.b16 %v1076, %v1070
    %v1251 = vpack.c.b16 %v1077, %v1071
    %v1252 = vpack.c.b16 %v1078, %v1072
    %v1253 = vpack.c.b16 %v1085, %v1079
    %v1254 = vpack.c.b16 %v1086, %v1080
    %v1255 = vpack.c.b16 %v1087, %v1081
    %v1256 = vpack.c.b16 %v1088, %v1082
    %v1257 = vpack.c.b16 %v1089, %v1083
    %v1258 = vpack.c.b16 %v1090, %v1084
    %v1259 = vpack.c.b16 %v1097, %v1091
    %v1260 = vpack.c.b16 %v1098, %v1092
    %v1261 = vpack.c.b16 %v1099, %v1093
    %v1262 = vpack.c.b16 %v1100, %v1094
    %v1263 = vpack.c.b16 %v1101, %v1095
    %v1264 = vpack.c.b16 %v1102, %v1096
    %v1265 = vpack.c.b16 %v1109, %v1103
    %v1266 = vpack.c.b16 %v1110, %v1104
    %v1267 = vpack.c.b16 %v1111, %v1105
    %v1268 = vpack.c.b16 %v1112, %v1106
    %v1269 = vpack.c.b16 %v1113, %v1107
    %v1270 = vpack.c.b16 %v1114, %v1108
    %v1271 = vpack.c.b16 %v1121, %v1115
    %v1272 = vpack.c.b16 %v1122, %v1116
    %v1273 = vpack.c.b16 %v1123, %v1117
    %v1274 = vpack.c.b16 %v1124, %v1118
    %v1275 = vpack.c.b16 %v1125, %v1119
    %v1276 = vpack.c.b16 %v1126, %v1120
    %v1277 = vpack.c.b16 %v1133, %v1127
    %v1278 = vpack.c.b16 %v1134, %v1128
    %v1279 = vpack.c.b16 %v1135, %v1129
    %v1280 = vpack.c.b16 %v1136, %v1130
    %v1281 = vpack.c.b16 %v1137, %v1131
    %v1282 = vpack.c.b16 %v1138, %v1132
    %v1283 = vpack.c.b16 %v1145, %v1139
    %v1284 = vpack.c.b16 %v1146, %v1140
    %v1285 = vpack.c.b16 %v1147, %v1141
    %v1286 = vpack.c.b16 %v1148, %v1142
    %v1287 = vpack.c.b16 %v1149, %v1143
    %v1288 = vpack.c.b16 %v1150, %v1144
    %v1289 = vpack.c.b16 %v1157, %v1151
    %v1290 = vpack.c.b16 %v1158, %v1152
    %v1291 = vpack.c.b16 %v1159, %v1153
    %v1292 = vpack.c.b16 %v1160, %v1154
    %v1293 = vpack.c.b16 %v1161, %v1155
    %v1294 = vpack.c.b16 %v1162, %v1156
    %v1295 = vpack.c.b16 %v1169, %v1163
    %v1296 = vpack.c.b16 %v1170, %v1164
    %v1297 = vpack.c.b16 %v1171, %v1165
    %v1298 = vpack.c.b16 %v1172, %v1166
    %v1299 = vpack.c.b16 %v1173, %v1167
    %v1300 = vpack.c.b16 %v1174, %v1168
    %v1301 = vpack.c.b16 %v1181, %v1175
    %v1302 = vpack.c.b16 %v1182, %v1176
    %v1303 = vpack.c.b16 %v1183, %v1177
    %v1304 = vpack.c.b16 %v1184, %v1178
    %v1305 = vpack.c.b16 %v1185, %v1179
    %v1306 = vpack.c.b16 %v1186, %v1180
    %v1307 = vpack.c.b16 %v1193, %v1187
    %v1308 = vpack.c.b16 %v1194, %v1188
    %v1309 = vpack.c.b16 %v1195, %v1189
    %v1310 = vpack.c.b16 %v1196, %v1190
    %v1311 = vpack.c.b16 %v1197, %v1191
    %v1312 = vpack.c.b16 %v1198, %v1192
    %v1313 = vpack.c.b16 %v1205, %v1199
    %v1314 = vpack.c.b16 %v1206, %v1200
    %v1315 = vpack.c.b16 %v1207, %v1201
    %v1316 = vpack.c.b16 %v1208, %v1202
    %v1317 = vpack.c.b16 %v1209, %v1203
    %v1318 = vpack.c.b16 %v1210, %v1204
    %v1319 = vpack.c.b16 %v1217, %v1211
    %v1320 = vpack.c.b16 %v1218, %v1212
    %v1321 = vpack.c.b16 %v1219, %v1213
    %v1322 = vpack.c.b16 %v1220, %v1214
    %v1323 = vpack.c.b16 %v1221, %v1215
    %v1324 = vpack.c.b16 %v1222, %v1216
    %v1325 = vpack.c.b16 %v1229, %v1223
    %v1326 = vpack.c.b16 %v1230, %v1224
    %v1327 = vpack.c.b16 %v1231, %v1225
    %v1328 = vpack.c.b16 %v1232, %v1226
    %v1329 = vpack.c.b16 %v1233, %v1227
    %v1330 = vpack.c.b16 %v1234, %v1228
    %1427 = vmatprep.subr.bf16.mxu0 %v1236
    %1428 = vmatpush1.bf16.msra.mxu0 %v1235
    %1429 = vmatprep.subr.bf16.mxu0 %v1242
    %1430 = vmatpush1.bf16.msra.mxu0 %v1241
    %1431 = vmatprep.subr.bf16.mxu0 %v1248
    %1432 = vmatpush1.bf16.msra.mxu0 %v1247
    %1433 = vmatprep.subr.bf16.mxu0 %v1254
    %1434 = vmatpush1.bf16.msra.mxu0 %v1253
    %1435 = vmatprep.subr.bf16.mxu0 %v1260
    %1436 = vmatpush1.bf16.msra.mxu0 %v1259
    %1437 = vmatprep.subr.bf16.mxu0 %v1266
    %1438 = vmatpush1.bf16.msra.mxu0 %v1265
    %1439 = vmatprep.subr.bf16.mxu0 %v1272
    %1440 = vmatpush1.bf16.msra.mxu0 %v1271
    %1441 = vmatprep.subr.bf16.mxu0 %v1278
    %1442 = vmatpush1.bf16.msra.mxu0 %v1277
    %1443 = vmatprep.subr.bf16.mxu0 %v1284
    %1444 = vmatpush1.bf16.msra.mxu0 %v1283
    %1445 = vmatprep.subr.bf16.mxu0 %v1290
    %1446 = vmatpush1.bf16.msra.mxu0 %v1289
    %1447 = vmatprep.subr.bf16.mxu0 %v1296
    %1448 = vmatpush1.bf16.msra.mxu0 %v1295
    %1449 = vmatprep.subr.bf16.mxu0 %v1302
    %1450 = vmatpush1.bf16.msra.mxu0 %v1301
    %1451 = vmatprep.subr.bf16.mxu0 %v1308
    %1452 = vmatpush1.bf16.msra.mxu0 %v1307
    %1453 = vmatprep.subr.bf16.mxu0 %v1314
    %1454 = vmatpush1.bf16.msra.mxu0 %v1313
    %1455 = vmatprep.subr.bf16.mxu0 %v1320
    %1456 = vmatpush1.bf16.msra.mxu0 %v1319
    %1457 = vmatprep.subr.bf16.mxu0 %v1326
    %1458 = vmatpush1.bf16.msra.mxu0 %v1325
    %1459 = vmatprep.mubr.bf16.mxu0 %v61
    %1460 = vmatmul.mubr.bf16.gmra.mrb[0].mxu0 %v60
    %v1461 = vpop.f32.mrb[0].mxu0
    %v1462 = vadd.f32 0.0, %v1461
    %v1463 = vpop.f32.mrb[0].mxu0
    %v1464 = vadd.f32 0.0, %v1463
    %v1465 = vpop.f32.mrb[0].mxu0
    %v1466 = vadd.f32 0.0, %v1465
    %v1467 = vpop.f32.mrb[0].mxu0
    %v1468 = vadd.f32 0.0, %v1467
    %1469 = vdwg.mxu0
    %1470 = vmatprep.subr.bf16.mxu0 %v1238
    %1471 = vmatpush1.bf16.msra.mxu0 %v1237
    %1472 = vmatprep.subr.bf16.mxu0 %v1244
    %1473 = vmatpush1.bf16.msra.mxu0 %v1243
    %1474 = vmatprep.subr.bf16.mxu0 %v1250
    %1475 = vmatpush1.bf16.msra.mxu0 %v1249
    %1476 = vmatprep.subr.bf16.mxu0 %v1256
    %1477 = vmatpush1.bf16.msra.mxu0 %v1255
    %1478 = vmatprep.subr.bf16.mxu0 %v1262
    %1479 = vmatpush1.bf16.msra.mxu0 %v1261
    %1480 = vmatprep.subr.bf16.mxu0 %v1268
    %1481 = vmatpush1.bf16.msra.mxu0 %v1267
    %1482 = vmatprep.subr.bf16.mxu0 %v1274
    %1483 = vmatpush1.bf16.msra.mxu0 %v1273
    %1484 = vmatprep.subr.bf16.mxu0 %v1280
    %1485 = vmatpush1.bf16.msra.mxu0 %v1279
    %1486 = vmatprep.subr.bf16.mxu0 %v1286
    %1487 = vmatpush1.bf16.msra.mxu0 %v1285
    %1488 = vmatprep.subr.bf16.mxu0 %v1292
    %1489 = vmatpush1.bf16.msra.mxu0 %v1291
    %1490 = vmatprep.subr.bf16.mxu0 %v1298
    %1491 = vmatpush1.bf16.msra.mxu0 %v1297
    %1492 = vmatprep.subr.bf16.mxu0 %v1304
    %1493 = vmatpush1.bf16.msra.mxu0 %v1303
    %1494 = vmatprep.subr.bf16.mxu0 %v1310
    %1495 = vmatpush1.bf16.msra.mxu0 %v1309
    %1496 = vmatprep.subr.bf16.mxu0 %v1316
    %1497 = vmatpush1.bf16.msra.mxu0 %v1315
    %1498 = vmatprep.subr.bf16.mxu0 %v1322
    %1499 = vmatpush1.bf16.msra.mxu0 %v1321
    %1500 = vmatprep.subr.bf16.mxu0 %v1328
    %1501 = vmatpush1.bf16.msra.mxu0 %v1327
    %1502 = vmatprep.mubr.bf16.mxu0 %v61
    %1503 = vmatmul.mubr.bf16.gmra.mrb[0].mxu0 %v60
    %v1504 = vpop.f32.mrb[0].mxu0
    %v1505 = vadd.f32 0.0, %v1504
    %v1506 = vpop.f32.mrb[0].mxu0
    %v1507 = vadd.f32 0.0, %v1506
    %v1508 = vpop.f32.mrb[0].mxu0
    %v1509 = vadd.f32 0.0, %v1508
    %v1510 = vpop.f32.mrb[0].mxu0
    %v1511 = vadd.f32 0.0, %v1510
    %1512 = vdwg.mxu0
    %1513 = vmatprep.subr.bf16.mxu0 %v1240
    %1514 = vmatpush1.bf16.msra.mxu0 %v1239
    %1515 = vmatprep.subr.bf16.mxu0 %v1246
    %1516 = vmatpush1.bf16.msra.mxu0 %v1245
    %1517 = vmatprep.subr.bf16.mxu0 %v1252
    %1518 = vmatpush1.bf16.msra.mxu0 %v1251
    %1519 = vmatprep.subr.bf16.mxu0 %v1258
    %1520 = vmatpush1.bf16.msra.mxu0 %v1257
    %1521 = vmatprep.subr.bf16.mxu0 %v1264
    %1522 = vmatpush1.bf16.msra.mxu0 %v1263
    %1523 = vmatprep.subr.bf16.mxu0 %v1270
    %1524 = vmatpush1.bf16.msra.mxu0 %v1269
    %1525 = vmatprep.subr.bf16.mxu0 %v1276
    %1526 = vmatpush1.bf16.msra.mxu0 %v1275
    %1527 = vmatprep.subr.bf16.mxu0 %v1282
    %1528 = vmatpush1.bf16.msra.mxu0 %v1281
    %1529 = vmatprep.subr.bf16.mxu0 %v1288
    %1530 = vmatpush1.bf16.msra.mxu0 %v1287
    %1531 = vmatprep.subr.bf16.mxu0 %v1294
    %1532 = vmatpush1.bf16.msra.mxu0 %v1293
    %1533 = vmatprep.subr.bf16.mxu0 %v1300
    %1534 = vmatpush1.bf16.msra.mxu0 %v1299
    %1535 = vmatprep.subr.bf16.mxu0 %v1306
    %1536 = vmatpush1.bf16.msra.mxu0 %v1305
    %1537 = vmatprep.subr.bf16.mxu0 %v1312
    %1538 = vmatpush1.bf16.msra.mxu0 %v1311
    %1539 = vmatprep.subr.bf16.mxu0 %v1318
    %1540 = vmatpush1.bf16.msra.mxu0 %v1317
    %1541 = vmatprep.subr.bf16.mxu0 %v1324
    %1542 = vmatpush1.bf16.msra.mxu0 %v1323
    %1543 = vmatprep.subr.bf16.mxu0 %v1330
    %1544 = vmatpush1.bf16.msra.mxu0 %v1329
    %1545 = vmatprep.mubr.bf16.mxu0 %v61
    %1546 = vmatmul.mubr.bf16.gmra.mrb[0].mxu0 %v60
    %v1547 = vpop.f32.mrb[0].mxu0
    %v1548 = vadd.f32 0.0, %v1547
    %v1549 = vpop.f32.mrb[0].mxu0
    %v1550 = vadd.f32 0.0, %v1549
    %v1551 = vpop.f32.mrb[0].mxu0
    %v1552 = vadd.f32 0.0, %v1551
    %v1553 = vpop.f32.mrb[0].mxu0
    %v1554 = vadd.f32 0.0, %v1553
    %1555 = vdwg.mxu0
    %v1556 = vmul.f32 %v839, %v1462
    %v1557 = vmul.f32 %v840, %v1464
    %v1558 = vmul.f32 %v841, %v1505
    %v1559 = vmul.f32 %v842, %v1507
    %v1560 = vmul.f32 %v843, %v1548
    %v1561 = vmul.f32 %v844, %v1550
    %v1562 = vmul.f32 %v845, %v1466
    %v1563 = vmul.f32 %v846, %v1468
    %v1564 = vmul.f32 %v847, %v1509
    %v1565 = vmul.f32 %v848, %v1511
    %v1566 = vmul.f32 %v849, %v1552
    %v1567 = vmul.f32 %v850, %v1554
    %v1568 = vpack.c.bf16 %v1562, %v1556
    %v1569 = vpack.c.bf16 %v1563, %v1557
    %v1570 = vpack.c.bf16 %v1564, %v1558
    %v1571 = vpack.c.bf16 %v1565, %v1559
    %v1572 = vpack.c.bf16 %v1566, %v1560
    %v1573 = vpack.c.bf16 %v1567, %v1561
    %v1574 = vld [vmem:[#allocation7] sm:$0xff]
    %v1575 = vld [vmem:[#allocation7 + $0x8] sm:$0xff]
    %v1576 = vld [vmem:[#allocation7 + $0x10] sm:$0xff]
    %v1577 = vld [vmem:[#allocation7 + $0x18] sm:$0xff]
    %v1578 = vld [vmem:[#allocation7 + $0x20] sm:$0xff]
    %v1579 = vld [vmem:[#allocation7 + $0x28] sm:$0xff]
    %v1580 = vld [vmem:[#allocation7 + $0x30] sm:$0xff]
    %v1581 = vld [vmem:[#allocation7 + $0x38] sm:$0xff]
    %v1582 = vld [vmem:[#allocation7 + $0x40] sm:$0xff]
    %v1583 = vld [vmem:[#allocation7 + $0x48] sm:$0xff]
    %v1584 = vld [vmem:[#allocation7 + $0x50] sm:$0xff]
    %v1585 = vld [vmem:[#allocation7 + $0x58] sm:$0xff]
    %v1586 = vld [vmem:[#allocation7 + $0x60] sm:$0xff]
    %v1587 = vld [vmem:[#allocation7 + $0x68] sm:$0xff]
    %v1588 = vld [vmem:[#allocation7 + $0x70] sm:$0xff]
    %v1589 = vld [vmem:[#allocation7 + $0x78] sm:$0xff]
    %v1590 = vld [vmem:[#allocation7 + $0x80] sm:$0xff]
    %v1591 = vld [vmem:[#allocation7 + $0x88] sm:$0xff]
    %v1592 = vld [vmem:[#allocation7 + $0x90] sm:$0xff]
    %v1593 = vld [vmem:[#allocation7 + $0x98] sm:$0xff]
    %v1594 = vld [vmem:[#allocation7 + $0xa0] sm:$0xff]
    %v1595 = vld [vmem:[#allocation7 + $0xa8] sm:$0xff]
    %v1596 = vld [vmem:[#allocation7 + $0xb0] sm:$0xff]
    %v1597 = vld [vmem:[#allocation7 + $0xb8] sm:$0xff]
    %v1598 = vld [vmem:[#allocation7 + $0xc0] sm:$0xff]
    %v1599 = vld [vmem:[#allocation7 + $0xc8] sm:$0xff]
    %v1600 = vld [vmem:[#allocation7 + $0xd0] sm:$0xff]
    %v1601 = vld [vmem:[#allocation7 + $0xd8] sm:$0xff]
    %v1602 = vld [vmem:[#allocation7 + $0xe0] sm:$0xff]
    %v1603 = vld [vmem:[#allocation7 + $0xe8] sm:$0xff]
    %v1604 = vld [vmem:[#allocation7 + $0xf0] sm:$0xff]
    %v1605 = vld [vmem:[#allocation7 + $0xf8] sm:$0xff]
    %v1606 = vld [vmem:[#allocation7 + $0x100] sm:$0xff]
    %v1607 = vld [vmem:[#allocation7 + $0x108] sm:$0xff]
    %v1608 = vld [vmem:[#allocation7 + $0x110] sm:$0xff]
    %v1609 = vld [vmem:[#allocation7 + $0x118] sm:$0xff]
    %v1610 = vld [vmem:[#allocation7 + $0x120] sm:$0xff]
    %v1611 = vld [vmem:[#allocation7 + $0x128] sm:$0xff]
    %v1612 = vld [vmem:[#allocation7 + $0x130] sm:$0xff]
    %v1613 = vld [vmem:[#allocation7 + $0x138] sm:$0xff]
    %v1614 = vld [vmem:[#allocation7 + $0x140] sm:$0xff]
    %v1615 = vld [vmem:[#allocation7 + $0x148] sm:$0xff]
    %v1616 = vld [vmem:[#allocation7 + $0x150] sm:$0xff]
    %v1617 = vld [vmem:[#allocation7 + $0x158] sm:$0xff]
    %v1618 = vld [vmem:[#allocation7 + $0x160] sm:$0xff]
    %v1619 = vld [vmem:[#allocation7 + $0x168] sm:$0xff]
    %v1620 = vld [vmem:[#allocation7 + $0x170] sm:$0xff]
    %v1621 = vld [vmem:[#allocation7 + $0x178] sm:$0xff]
    %v1622 = vld [vmem:[#allocation7 + $0x180] sm:$0xff]
    %v1623 = vld [vmem:[#allocation7 + $0x188] sm:$0xff]
    %v1624 = vld [vmem:[#allocation7 + $0x190] sm:$0xff]
    %v1625 = vld [vmem:[#allocation7 + $0x198] sm:$0xff]
    %v1626 = vld [vmem:[#allocation7 + $0x1a0] sm:$0xff]
    %v1627 = vld [vmem:[#allocation7 + $0x1a8] sm:$0xff]
    %v1628 = vld [vmem:[#allocation7 + $0x1b0] sm:$0xff]
    %v1629 = vld [vmem:[#allocation7 + $0x1b8] sm:$0xff]
    %v1630 = vld [vmem:[#allocation7 + $0x1c0] sm:$0xff]
    %v1631 = vld [vmem:[#allocation7 + $0x1c8] sm:$0xff]
    %v1632 = vld [vmem:[#allocation7 + $0x1d0] sm:$0xff]
    %v1633 = vld [vmem:[#allocation7 + $0x1d8] sm:$0xff]
    %v1634 = vld [vmem:[#allocation7 + $0x1e0] sm:$0xff]
    %v1635 = vld [vmem:[#allocation7 + $0x1e8] sm:$0xff]
    %v1636 = vld [vmem:[#allocation7 + $0x1f0] sm:$0xff]
    %v1637 = vld [vmem:[#allocation7 + $0x1f8] sm:$0xff]
    %v1638 = vld [vmem:[#allocation7 + $0x200] sm:$0xff]
    %v1639 = vld [vmem:[#allocation7 + $0x208] sm:$0xff]
    %v1640 = vld [vmem:[#allocation7 + $0x210] sm:$0xff]
    %v1641 = vld [vmem:[#allocation7 + $0x218] sm:$0xff]
    %v1642 = vld [vmem:[#allocation7 + $0x220] sm:$0xff]
    %v1643 = vld [vmem:[#allocation7 + $0x228] sm:$0xff]
    %v1644 = vld [vmem:[#allocation7 + $0x230] sm:$0xff]
    %v1645 = vld [vmem:[#allocation7 + $0x238] sm:$0xff]
    %v1646 = vld [vmem:[#allocation7 + $0x240] sm:$0xff]
    %v1647 = vld [vmem:[#allocation7 + $0x248] sm:$0xff]
    %v1648 = vld [vmem:[#allocation7 + $0x250] sm:$0xff]
    %v1649 = vld [vmem:[#allocation7 + $0x258] sm:$0xff]
    %v1650 = vld [vmem:[#allocation7 + $0x260] sm:$0xff]
    %v1651 = vld [vmem:[#allocation7 + $0x268] sm:$0xff]
    %v1652 = vld [vmem:[#allocation7 + $0x270] sm:$0xff]
    %v1653 = vld [vmem:[#allocation7 + $0x278] sm:$0xff]
    %v1654 = vld [vmem:[#allocation7 + $0x280] sm:$0xff]
    %v1655 = vld [vmem:[#allocation7 + $0x288] sm:$0xff]
    %v1656 = vld [vmem:[#allocation7 + $0x290] sm:$0xff]
    %v1657 = vld [vmem:[#allocation7 + $0x298] sm:$0xff]
    %v1658 = vld [vmem:[#allocation7 + $0x2a0] sm:$0xff]
    %v1659 = vld [vmem:[#allocation7 + $0x2a8] sm:$0xff]
    %v1660 = vld [vmem:[#allocation7 + $0x2b0] sm:$0xff]
    %v1661 = vld [vmem:[#allocation7 + $0x2b8] sm:$0xff]
    %v1662 = vld [vmem:[#allocation7 + $0x2c0] sm:$0xff]
    %v1663 = vld [vmem:[#allocation7 + $0x2c8] sm:$0xff]
    %v1664 = vld [vmem:[#allocation7 + $0x2d0] sm:$0xff]
    %v1665 = vld [vmem:[#allocation7 + $0x2d8] sm:$0xff]
    %v1666 = vld [vmem:[#allocation7 + $0x2e0] sm:$0xff]
    %v1667 = vld [vmem:[#allocation7 + $0x2e8] sm:$0xff]
    %v1668 = vld [vmem:[#allocation7 + $0x2f0] sm:$0xff]
    %v1669 = vld [vmem:[#allocation7 + $0x2f8] sm:$0xff]
    %v1766 = vunpack.c.l.b16 %v1574
    %v1767 = vunpack.c.h.b16 %v1574
    %v1768 = vunpack.c.l.b16 %v1575
    %v1769 = vunpack.c.h.b16 %v1575
    %v1770 = vunpack.c.l.b16 %v1576
    %v1771 = vunpack.c.h.b16 %v1576
    %v1772 = vunpack.c.l.b16 %v1577
    %v1773 = vunpack.c.h.b16 %v1577
    %v1774 = vunpack.c.l.b16 %v1578
    %v1775 = vunpack.c.h.b16 %v1578
    %v1776 = vunpack.c.l.b16 %v1579
    %v1777 = vunpack.c.h.b16 %v1579
    %v1778 = vunpack.c.l.b16 %v1580
    %v1779 = vunpack.c.h.b16 %v1580
    %v1780 = vunpack.c.l.b16 %v1581
    %v1781 = vunpack.c.h.b16 %v1581
    %v1782 = vunpack.c.l.b16 %v1582
    %v1783 = vunpack.c.h.b16 %v1582
    %v1784 = vunpack.c.l.b16 %v1583
    %v1785 = vunpack.c.h.b16 %v1583
    %v1786 = vunpack.c.l.b16 %v1584
    %v1787 = vunpack.c.h.b16 %v1584
    %v1788 = vunpack.c.l.b16 %v1585
    %v1789 = vunpack.c.h.b16 %v1585
    %v1790 = vunpack.c.l.b16 %v1586
    %v1791 = vunpack.c.h.b16 %v1586
    %v1792 = vunpack.c.l.b16 %v1587
    %v1793 = vunpack.c.h.b16 %v1587
    %v1794 = vunpack.c.l.b16 %v1588
    %v1795 = vunpack.c.h.b16 %v1588
    %v1796 = vunpack.c.l.b16 %v1589
    %v1797 = vunpack.c.h.b16 %v1589
    %v1798 = vunpack.c.l.b16 %v1590
    %v1799 = vunpack.c.h.b16 %v1590
    %v1800 = vunpack.c.l.b16 %v1591
    %v1801 = vunpack.c.h.b16 %v1591
    %v1802 = vunpack.c.l.b16 %v1592
    %v1803 = vunpack.c.h.b16 %v1592
    %v1804 = vunpack.c.l.b16 %v1593
    %v1805 = vunpack.c.h.b16 %v1593
    %v1806 = vunpack.c.l.b16 %v1594
    %v1807 = vunpack.c.h.b16 %v1594
    %v1808 = vunpack.c.l.b16 %v1595
    %v1809 = vunpack.c.h.b16 %v1595
    %v1810 = vunpack.c.l.b16 %v1596
    %v1811 = vunpack.c.h.b16 %v1596
    %v1812 = vunpack.c.l.b16 %v1597
    %v1813 = vunpack.c.h.b16 %v1597
    %v1814 = vunpack.c.l.b16 %v1598
    %v1815 = vunpack.c.h.b16 %v1598
    %v1816 = vunpack.c.l.b16 %v1599
    %v1817 = vunpack.c.h.b16 %v1599
    %v1818 = vunpack.c.l.b16 %v1600
    %v1819 = vunpack.c.h.b16 %v1600
    %v1820 = vunpack.c.l.b16 %v1601
    %v1821 = vunpack.c.h.b16 %v1601
    %v1822 = vunpack.c.l.b16 %v1602
    %v1823 = vunpack.c.h.b16 %v1602
    %v1824 = vunpack.c.l.b16 %v1603
    %v1825 = vunpack.c.h.b16 %v1603
    %v1826 = vunpack.c.l.b16 %v1604
    %v1827 = vunpack.c.h.b16 %v1604
    %v1828 = vunpack.c.l.b16 %v1605
    %v1829 = vunpack.c.h.b16 %v1605
    %v1830 = vunpack.c.l.b16 %v1606
    %v1831 = vunpack.c.h.b16 %v1606
    %v1832 = vunpack.c.l.b16 %v1607
    %v1833 = vunpack.c.h.b16 %v1607
    %v1834 = vunpack.c.l.b16 %v1608
    %v1835 = vunpack.c.h.b16 %v1608
    %v1836 = vunpack.c.l.b16 %v1609
    %v1837 = vunpack.c.h.b16 %v1609
    %v1838 = vunpack.c.l.b16 %v1610
    %v1839 = vunpack.c.h.b16 %v1610
    %v1840 = vunpack.c.l.b16 %v1611
    %v1841 = vunpack.c.h.b16 %v1611
    %v1842 = vunpack.c.l.b16 %v1612
    %v1843 = vunpack.c.h.b16 %v1612
    %v1844 = vunpack.c.l.b16 %v1613
    %v1845 = vunpack.c.h.b16 %v1613
    %v1846 = vunpack.c.l.b16 %v1614
    %v1847 = vunpack.c.h.b16 %v1614
    %v1848 = vunpack.c.l.b16 %v1615
    %v1849 = vunpack.c.h.b16 %v1615
    %v1850 = vunpack.c.l.b16 %v1616
    %v1851 = vunpack.c.h.b16 %v1616
    %v1852 = vunpack.c.l.b16 %v1617
    %v1853 = vunpack.c.h.b16 %v1617
    %v1854 = vunpack.c.l.b16 %v1618
    %v1855 = vunpack.c.h.b16 %v1618
    %v1856 = vunpack.c.l.b16 %v1619
    %v1857 = vunpack.c.h.b16 %v1619
    %v1858 = vunpack.c.l.b16 %v1620
    %v1859 = vunpack.c.h.b16 %v1620
    %v1860 = vunpack.c.l.b16 %v1621
    %v1861 = vunpack.c.h.b16 %v1621
    %v1862 = vunpack.c.l.b16 %v1622
    %v1863 = vunpack.c.h.b16 %v1622
    %v1864 = vunpack.c.l.b16 %v1623
    %v1865 = vunpack.c.h.b16 %v1623
    %v1866 = vunpack.c.l.b16 %v1624
    %v1867 = vunpack.c.h.b16 %v1624
    %v1868 = vunpack.c.l.b16 %v1625
    %v1869 = vunpack.c.h.b16 %v1625
    %v1870 = vunpack.c.l.b16 %v1626
    %v1871 = vunpack.c.h.b16 %v1626
    %v1872 = vunpack.c.l.b16 %v1627
    %v1873 = vunpack.c.h.b16 %v1627
    %v1874 = vunpack.c.l.b16 %v1628
    %v1875 = vunpack.c.h.b16 %v1628
    %v1876 = vunpack.c.l.b16 %v1629
    %v1877 = vunpack.c.h.b16 %v1629
    %v1878 = vunpack.c.l.b16 %v1630
    %v1879 = vunpack.c.h.b16 %v1630
    %v1880 = vunpack.c.l.b16 %v1631
    %v1881 = vunpack.c.h.b16 %v1631
    %v1882 = vunpack.c.l.b16 %v1632
    %v1883 = vunpack.c.h.b16 %v1632
    %v1884 = vunpack.c.l.b16 %v1633
    %v1885 = vunpack.c.h.b16 %v1633
    %v1886 = vunpack.c.l.b16 %v1634
    %v1887 = vunpack.c.h.b16 %v1634
    %v1888 = vunpack.c.l.b16 %v1635
    %v1889 = vunpack.c.h.b16 %v1635
    %v1890 = vunpack.c.l.b16 %v1636
    %v1891 = vunpack.c.h.b16 %v1636
    %v1892 = vunpack.c.l.b16 %v1637
    %v1893 = vunpack.c.h.b16 %v1637
    %v1894 = vunpack.c.l.b16 %v1638
    %v1895 = vunpack.c.h.b16 %v1638
    %v1896 = vunpack.c.l.b16 %v1639
    %v1897 = vunpack.c.h.b16 %v1639
    %v1898 = vunpack.c.l.b16 %v1640
    %v1899 = vunpack.c.h.b16 %v1640
    %v1900 = vunpack.c.l.b16 %v1641
    %v1901 = vunpack.c.h.b16 %v1641
    %v1902 = vunpack.c.l.b16 %v1642
    %v1903 = vunpack.c.h.b16 %v1642
    %v1904 = vunpack.c.l.b16 %v1643
    %v1905 = vunpack.c.h.b16 %v1643
    %v1906 = vunpack.c.l.b16 %v1644
    %v1907 = vunpack.c.h.b16 %v1644
    %v1908 = vunpack.c.l.b16 %v1645
    %v1909 = vunpack.c.h.b16 %v1645
    %v1910 = vunpack.c.l.b16 %v1646
    %v1911 = vunpack.c.h.b16 %v1646
    %v1912 = vunpack.c.l.b16 %v1647
    %v1913 = vunpack.c.h.b16 %v1647
    %v1914 = vunpack.c.l.b16 %v1648
    %v1915 = vunpack.c.h.b16 %v1648
    %v1916 = vunpack.c.l.b16 %v1649
    %v1917 = vunpack.c.h.b16 %v1649
    %v1918 = vunpack.c.l.b16 %v1650
    %v1919 = vunpack.c.h.b16 %v1650
    %v1920 = vunpack.c.l.b16 %v1651
    %v1921 = vunpack.c.h.b16 %v1651
    %v1922 = vunpack.c.l.b16 %v1652
    %v1923 = vunpack.c.h.b16 %v1652
    %v1924 = vunpack.c.l.b16 %v1653
    %v1925 = vunpack.c.h.b16 %v1653
    %v1926 = vunpack.c.l.b16 %v1654
    %v1927 = vunpack.c.h.b16 %v1654
    %v1928 = vunpack.c.l.b16 %v1655
    %v1929 = vunpack.c.h.b16 %v1655
    %v1930 = vunpack.c.l.b16 %v1656
    %v1931 = vunpack.c.h.b16 %v1656
    %v1932 = vunpack.c.l.b16 %v1657
    %v1933 = vunpack.c.h.b16 %v1657
    %v1934 = vunpack.c.l.b16 %v1658
    %v1935 = vunpack.c.h.b16 %v1658
    %v1936 = vunpack.c.l.b16 %v1659
    %v1937 = vunpack.c.h.b16 %v1659
    %v1938 = vunpack.c.l.b16 %v1660
    %v1939 = vunpack.c.h.b16 %v1660
    %v1940 = vunpack.c.l.b16 %v1661
    %v1941 = vunpack.c.h.b16 %v1661
    %v1942 = vunpack.c.l.b16 %v1662
    %v1943 = vunpack.c.h.b16 %v1662
    %v1944 = vunpack.c.l.b16 %v1663
    %v1945 = vunpack.c.h.b16 %v1663
    %v1946 = vunpack.c.l.b16 %v1664
    %v1947 = vunpack.c.h.b16 %v1664
    %v1948 = vunpack.c.l.b16 %v1665
    %v1949 = vunpack.c.h.b16 %v1665
    %v1950 = vunpack.c.l.b16 %v1666
    %v1951 = vunpack.c.h.b16 %v1666
    %v1952 = vunpack.c.l.b16 %v1667
    %v1953 = vunpack.c.h.b16 %v1667
    %v1954 = vunpack.c.l.b16 %v1668
    %v1955 = vunpack.c.h.b16 %v1668
    %v1956 = vunpack.c.l.b16 %v1669
    %v1957 = vunpack.c.h.b16 %v1669
    %v1958 = vpack.c.b16 %v1768, %v1766
    %v1959 = vpack.c.b16 %v1769, %v1767
    %v1960 = vpack.c.b16 %v1772, %v1770
    %v1961 = vpack.c.b16 %v1773, %v1771
    %v1962 = vpack.c.b16 %v1776, %v1774
    %v1963 = vpack.c.b16 %v1777, %v1775
    %v1964 = vpack.c.b16 %v1780, %v1778
    %v1965 = vpack.c.b16 %v1781, %v1779
    %v1966 = vpack.c.b16 %v1784, %v1782
    %v1967 = vpack.c.b16 %v1785, %v1783
    %v1968 = vpack.c.b16 %v1788, %v1786
    %v1969 = vpack.c.b16 %v1789, %v1787
    %v1970 = vpack.c.b16 %v1792, %v1790
    %v1971 = vpack.c.b16 %v1793, %v1791
    %v1972 = vpack.c.b16 %v1796, %v1794
    %v1973 = vpack.c.b16 %v1797, %v1795
    %v1974 = vpack.c.b16 %v1800, %v1798
    %v1975 = vpack.c.b16 %v1801, %v1799
    %v1976 = vpack.c.b16 %v1804, %v1802
    %v1977 = vpack.c.b16 %v1805, %v1803
    %v1978 = vpack.c.b16 %v1808, %v1806
    %v1979 = vpack.c.b16 %v1809, %v1807
    %v1980 = vpack.c.b16 %v1812, %v1810
    %v1981 = vpack.c.b16 %v1813, %v1811
    %v1982 = vpack.c.b16 %v1816, %v1814
    %v1983 = vpack.c.b16 %v1817, %v1815
    %v1984 = vpack.c.b16 %v1820, %v1818
    %v1985 = vpack.c.b16 %v1821, %v1819
    %v1986 = vpack.c.b16 %v1824, %v1822
    %v1987 = vpack.c.b16 %v1825, %v1823
    %v1988 = vpack.c.b16 %v1828, %v1826
    %v1989 = vpack.c.b16 %v1829, %v1827
    %v1990 = vpack.c.b16 %v1832, %v1830
    %v1991 = vpack.c.b16 %v1833, %v1831
    %v1992 = vpack.c.b16 %v1836, %v1834
    %v1993 = vpack.c.b16 %v1837, %v1835
    %v1994 = vpack.c.b16 %v1840, %v1838
    %v1995 = vpack.c.b16 %v1841, %v1839
    %v1996 = vpack.c.b16 %v1844, %v1842
    %v1997 = vpack.c.b16 %v1845, %v1843
    %v1998 = vpack.c.b16 %v1848, %v1846
    %v1999 = vpack.c.b16 %v1849, %v1847
    %v2000 = vpack.c.b16 %v1852, %v1850
    %v2001 = vpack.c.b16 %v1853, %v1851
    %v2002 = vpack.c.b16 %v1856, %v1854
    %v2003 = vpack.c.b16 %v1857, %v1855
    %v2004 = vpack.c.b16 %v1860, %v1858
    %v2005 = vpack.c.b16 %v1861, %v1859
    %v2006 = vpack.c.b16 %v1864, %v1862
    %v2007 = vpack.c.b16 %v1865, %v1863
    %v2008 = vpack.c.b16 %v1868, %v1866
    %v2009 = vpack.c.b16 %v1869, %v1867
    %v2010 = vpack.c.b16 %v1872, %v1870
    %v2011 = vpack.c.b16 %v1873, %v1871
    %v2012 = vpack.c.b16 %v1876, %v1874
    %v2013 = vpack.c.b16 %v1877, %v1875
    %v2014 = vpack.c.b16 %v1880, %v1878
    %v2015 = vpack.c.b16 %v1881, %v1879
    %v2016 = vpack.c.b16 %v1884, %v1882
    %v2017 = vpack.c.b16 %v1885, %v1883
    %v2018 = vpack.c.b16 %v1888, %v1886
    %v2019 = vpack.c.b16 %v1889, %v1887
    %v2020 = vpack.c.b16 %v1892, %v1890
    %v2021 = vpack.c.b16 %v1893, %v1891
    %v2022 = vpack.c.b16 %v1896, %v1894
    %v2023 = vpack.c.b16 %v1897, %v1895
    %v2024 = vpack.c.b16 %v1900, %v1898
    %v2025 = vpack.c.b16 %v1901, %v1899
    %v2026 = vpack.c.b16 %v1904, %v1902
    %v2027 = vpack.c.b16 %v1905, %v1903
    %v2028 = vpack.c.b16 %v1908, %v1906
    %v2029 = vpack.c.b16 %v1909, %v1907
    %v2030 = vpack.c.b16 %v1912, %v1910
    %v2031 = vpack.c.b16 %v1913, %v1911
    %v2032 = vpack.c.b16 %v1916, %v1914
    %v2033 = vpack.c.b16 %v1917, %v1915
    %v2034 = vpack.c.b16 %v1920, %v1918
    %v2035 = vpack.c.b16 %v1921, %v1919
    %v2036 = vpack.c.b16 %v1924, %v1922
    %v2037 = vpack.c.b16 %v1925, %v1923
    %v2038 = vpack.c.b16 %v1928, %v1926
    %v2039 = vpack.c.b16 %v1929, %v1927
    %v2040 = vpack.c.b16 %v1932, %v1930
    %v2041 = vpack.c.b16 %v1933, %v1931
    %v2042 = vpack.c.b16 %v1936, %v1934
    %v2043 = vpack.c.b16 %v1937, %v1935
    %v2044 = vpack.c.b16 %v1940, %v1938
    %v2045 = vpack.c.b16 %v1941, %v1939
    %v2046 = vpack.c.b16 %v1944, %v1942
    %v2047 = vpack.c.b16 %v1945, %v1943
    %v2048 = vpack.c.b16 %v1948, %v1946
    %v2049 = vpack.c.b16 %v1949, %v1947
    %v2050 = vpack.c.b16 %v1952, %v1950
    %v2051 = vpack.c.b16 %v1953, %v1951
    %v2052 = vpack.c.b16 %v1956, %v1954
    %v2053 = vpack.c.b16 %v1957, %v1955
    %2150 = vmatprep.subr.bf16.mxu0 %v1959
    %2151 = vmatpush1.bf16.msra.mxu0 %v1958
    %2152 = vmatprep.subr.bf16.mxu0 %v1961
    %2153 = vmatpush1.bf16.msra.mxu0 %v1960
    %2154 = vmatprep.subr.bf16.mxu0 %v1963
    %2155 = vmatpush1.bf16.msra.mxu0 %v1962
    %2156 = vmatprep.subr.bf16.mxu0 %v1965
    %2157 = vmatpush1.bf16.msra.mxu0 %v1964
    %2158 = vmatprep.subr.bf16.mxu0 %v1967
    %2159 = vmatpush1.bf16.msra.mxu0 %v1966
    %2160 = vmatprep.subr.bf16.mxu0 %v1969
    %2161 = vmatpush1.bf16.msra.mxu0 %v1968
    %2162 = vmatprep.subr.bf16.mxu0 %v1971
    %2163 = vmatpush1.bf16.msra.mxu0 %v1970
    %2164 = vmatprep.subr.bf16.mxu0 %v1973
    %2165 = vmatpush1.bf16.msra.mxu0 %v1972
    %2166 = vmatprep.subr.bf16.mxu0 %v1975
    %2167 = vmatpush1.bf16.msra.mxu0 %v1974
    %2168 = vmatprep.subr.bf16.mxu0 %v1977
    %2169 = vmatpush1.bf16.msra.mxu0 %v1976
    %2170 = vmatprep.subr.bf16.mxu0 %v1979
    %2171 = vmatpush1.bf16.msra.mxu0 %v1978
    %2172 = vmatprep.subr.bf16.mxu0 %v1981
    %2173 = vmatpush1.bf16.msra.mxu0 %v1980
    %2174 = vmatprep.subr.bf16.mxu0 %v1983
    %2175 = vmatpush1.bf16.msra.mxu0 %v1982
    %2176 = vmatprep.subr.bf16.mxu0 %v1985
    %2177 = vmatpush1.bf16.msra.mxu0 %v1984
    %2178 = vmatprep.subr.bf16.mxu0 %v1987
    %2179 = vmatpush1.bf16.msra.mxu0 %v1986
    %2180 = vmatprep.subr.bf16.mxu0 %v1989
    %2181 = vmatpush1.bf16.msra.mxu0 %v1988
    %2182 = vmatprep.mubr.bf16.mxu0 %v1569
    %2183 = vmatmul.mubr.bf16.gmra.mrb[0].mxu0 %v1568
    %v2184 = vpop.f32.mrb[0].mxu0
    %v2185 = vadd.f32 0.0, %v2184
    %v2186 = vpop.f32.mrb[0].mxu0
    %v2187 = vadd.f32 0.0, %v2186
    %v2188 = vpop.f32.mrb[0].mxu0
    %v2189 = vadd.f32 0.0, %v2188
    %v2190 = vpop.f32.mrb[0].mxu0
    %v2191 = vadd.f32 0.0, %v2190
    %2192 = vdwg.mxu0
    %2193 = vmatprep.subr.bf16.mxu0 %v1991
    %2194 = vmatpush1.bf16.msra.mxu0 %v1990
    %2195 = vmatprep.subr.bf16.mxu0 %v1993
    %2196 = vmatpush1.bf16.msra.mxu0 %v1992
    %2197 = vmatprep.subr.bf16.mxu0 %v1995
    %2198 = vmatpush1.bf16.msra.mxu0 %v1994
    %2199 = vmatprep.subr.bf16.mxu0 %v1997
    %2200 = vmatpush1.bf16.msra.mxu0 %v1996
    %2201 = vmatprep.subr.bf16.mxu0 %v1999
    %2202 = vmatpush1.bf16.msra.mxu0 %v1998
    %2203 = vmatprep.subr.bf16.mxu0 %v2001
    %2204 = vmatpush1.bf16.msra.mxu0 %v2000
    %2205 = vmatprep.subr.bf16.mxu0 %v2003
    %2206 = vmatpush1.bf16.msra.mxu0 %v2002
    %2207 = vmatprep.subr.bf16.mxu0 %v2005
    %2208 = vmatpush1.bf16.msra.mxu0 %v2004
    %2209 = vmatprep.subr.bf16.mxu0 %v2007
    %2210 = vmatpush1.bf16.msra.mxu0 %v2006
    %2211 = vmatprep.subr.bf16.mxu0 %v2009
    %2212 = vmatpush1.bf16.msra.mxu0 %v2008
    %2213 = vmatprep.subr.bf16.mxu0 %v2011
    %2214 = vmatpush1.bf16.msra.mxu0 %v2010
    %2215 = vmatprep.subr.bf16.mxu0 %v2013
    %2216 = vmatpush1.bf16.msra.mxu0 %v2012
    %2217 = vmatprep.subr.bf16.mxu0 %v2015
    %2218 = vmatpush1.bf16.msra.mxu0 %v2014
    %2219 = vmatprep.subr.bf16.mxu0 %v2017
    %2220 = vmatpush1.bf16.msra.mxu0 %v2016
    %2221 = vmatprep.subr.bf16.mxu0 %v2019
    %2222 = vmatpush1.bf16.msra.mxu0 %v2018
    %2223 = vmatprep.subr.bf16.mxu0 %v2021
    %2224 = vmatpush1.bf16.msra.mxu0 %v2020
    %2225 = vmatprep.mubr.bf16.mxu0 %v1571
    %2226 = vmatmul.mubr.bf16.gmra.mrb[0].mxu0 %v1570
    %v2227 = vpop.f32.mrb[0].mxu0
    %v2228 = vadd.f32 %v2185, %v2227
    %v2229 = vpop.f32.mrb[0].mxu0
    %v2230 = vadd.f32 %v2187, %v2229
    %v2231 = vpop.f32.mrb[0].mxu0
    %v2232 = vadd.f32 %v2189, %v2231
    %v2233 = vpop.f32.mrb[0].mxu0
    %v2234 = vadd.f32 %v2191, %v2233
    %2235 = vdwg.mxu0
    %2236 = vmatprep.subr.bf16.mxu0 %v2023
    %2237 = vmatpush1.bf16.msra.mxu0 %v2022
    %2238 = vmatprep.subr.bf16.mxu0 %v2025
    %2239 = vmatpush1.bf16.msra.mxu0 %v2024
    %2240 = vmatprep.subr.bf16.mxu0 %v2027
    %2241 = vmatpush1.bf16.msra.mxu0 %v2026
    %2242 = vmatprep.subr.bf16.mxu0 %v2029
    %2243 = vmatpush1.bf16.msra.mxu0 %v2028
    %2244 = vmatprep.subr.bf16.mxu0 %v2031
    %2245 = vmatpush1.bf16.msra.mxu0 %v2030
    %2246 = vmatprep.subr.bf16.mxu0 %v2033
    %2247 = vmatpush1.bf16.msra.mxu0 %v2032
    %2248 = vmatprep.subr.bf16.mxu0 %v2035
    %2249 = vmatpush1.bf16.msra.mxu0 %v2034
    %2250 = vmatprep.subr.bf16.mxu0 %v2037
    %2251 = vmatpush1.bf16.msra.mxu0 %v2036
    %2252 = vmatprep.subr.bf16.mxu0 %v2039
    %2253 = vmatpush1.bf16.msra.mxu0 %v2038
    %2254 = vmatprep.subr.bf16.mxu0 %v2041
    %2255 = vmatpush1.bf16.msra.mxu0 %v2040
    %2256 = vmatprep.subr.bf16.mxu0 %v2043
    %2257 = vmatpush1.bf16.msra.mxu0 %v2042
    %2258 = vmatprep.subr.bf16.mxu0 %v2045
    %2259 = vmatpush1.bf16.msra.mxu0 %v2044
    %2260 = vmatprep.subr.bf16.mxu0 %v2047
    %2261 = vmatpush1.bf16.msra.mxu0 %v2046
    %2262 = vmatprep.subr.bf16.mxu0 %v2049
    %2263 = vmatpush1.bf16.msra.mxu0 %v2048
    %2264 = vmatprep.subr.bf16.mxu0 %v2051
    %2265 = vmatpush1.bf16.msra.mxu0 %v2050
    %2266 = vmatprep.subr.bf16.mxu0 %v2053
    %2267 = vmatpush1.bf16.msra.mxu0 %v2052
    %2268 = vmatprep.mubr.bf16.mxu0 %v1573
    %2269 = vmatmul.mubr.bf16.gmra.mrb[0].mxu0 %v1572
    %v2270 = vpop.f32.mrb[0].mxu0
    %v2271 = vadd.f32 %v2228, %v2270
    %v2272 = vpop.f32.mrb[0].mxu0
    %v2273 = vadd.f32 %v2230, %v2272
    %v2274 = vpop.f32.mrb[0].mxu0
    %v2275 = vadd.f32 %v2232, %v2274
    %v2276 = vpop.f32.mrb[0].mxu0
    %v2277 = vadd.f32 %v2234, %v2276
    %2278 = vdwg.mxu0
    %2279 = vst [vmem:[#allocation8] sm:$0xff] %v2271
    %2280 = vst [vmem:[#allocation8 + $0x8] sm:$0xff] %v2273
    %2281 = vst [vmem:[#allocation8 + $0x10] sm:$0xff] %v2275
    %2282 = vst [vmem:[#allocation8 + $0x18] sm:$0xff] %v2277
    // Predicated region
    $region26: #{tpu_custom_call.1} parent=1 // pred_check
      _
    $region27: #{tpu_custom_call.1} parent=1 // pred_check_branch
      %2284 = sbr.rel (0) target = $region29
    $region28: #{tpu_custom_call.1} parent=1 // pred_region
      %s2286 = ssub.s32 512, 512
      %2287 = vsyncadd [#allocation4], %s2286
      %s2288 = sshll.u32 [#allocation8], 4
      %s2289 = int_to_ptr.vmem [resolvable:$true] %s2288
      %2294 = dma.vmem_to_hbm [thread:$0]  %s2289, 512, %s3, [#allocation4], 256, 256, 16
    $region29: #{tpu_custom_call.1} parent=1 // pred_fallthru
      _
    // Predicated region
    $region30: #{tpu_custom_call.1} parent=1 // pred_check
      _
    $region31: #{tpu_custom_call.1} parent=1 // pred_check_branch
      %2296 = sbr.rel (0) target = $region33
    $region32: #{tpu_custom_call.1} parent=1 // pred_region
      %2297 = dma.done [#allocation4], 512
    $region33: #{tpu_custom_call.1} parent=1 // pred_fallthru
      _
    %2298 = vsyncpa [#allocation3], 1
    %2299 = vsyncpa [#allocation6], 1
    %2300 = vsyncpa [#allocation4], 1

</llo_original>
